<compile_context>
chip_gen: v5e
topology: v5e:2x2
jax: 0.10.0
libtpu: 0.0.40
codegen_flags: <defaults>
</compile_context>

<pallas_src>
import functools
import math

import jax
import jax.numpy as jnp
from jax import lax
from jax.experimental import pallas as pl
from jax.experimental.pallas import tpu as pltpu

NEG_SLOPE = 0.01      # nn.LeakyReLU default
BN_EPS = 1e-5         # nn.BatchNorm2d default

# (kh, kw, dilation, padding) of the three spatial convs in the block.
_CONV1 = (3, 3, 1, 1)
_CONV2 = (3, 3, 2, 2)
_CONV3 = (2, 2, 2, 1)


def _row_shifts(kh, dil, pad):
    return tuple(i * dil - pad for i in range(kh))


_SHIFTS1 = _row_shifts(_CONV1[0], _CONV1[2], _CONV1[3])   # (-1, 0, 1)
_SHIFTS2 = _row_shifts(_CONV2[0], _CONV2[2], _CONV2[3])   # (-2, 0, 2)
_SHIFTS3 = _row_shifts(_CONV3[0], _CONV3[2], _CONV3[3])   # (-1, 1)
PMAX = max(abs(s) for s in _SHIFTS1 + _SHIFTS2 + _SHIFTS3)  # = 2 halo rows


def _leaky(v):
    # max(v, a*v) == LeakyReLU(v) for 0 < a < 1 -> mul+max (2 VPU ops) instead of cmp+sel+mul.
    return jnp.maximum(v, NEG_SLOPE * v)


# -----------------------------------------------------------------------------
# Kernel: one grid step == Nb batch images fused as (Nb*H, C*W) lane-dense slabs.
# -----------------------------------------------------------------------------
def _res_block_kernel(H, pmax, shifts1, shifts2, shifts3,
                      x_ref,
                      wres_ref, bres_ref,
                      w1_ref, b1_ref, t1_ref,
                      w2_ref, b2_ref, t2_ref,
                      w3_ref, b3_ref, t3_ref,
                      w4_ref, b4_ref, t4_ref,
                      poolre_ref, poolro_ref, poolp2_ref,
                      convout_ref, pool_ref,
                      rp_ref):
    f32, bf16 = jnp.float32, jnp.bfloat16
    R = x_ref.shape[0]                                   # Nb*H fused rows in this step
    # Row index within its own image; rows whose shifted source falls in another image
    # (or in the never-written scratch halo rows) are zeroed via this mask, so the halo
    # rows only exist to keep the shifted static slices in-bounds.
    row_in_img = lax.broadcasted_iota(jnp.int32, (R, 1), 0) % H

    def conv(a, w_ref_, b_ref_, shifts):
        """y = concat_taps(row_shift(a, s)) @ W_toeplitz + b  -- a single MXU matmul."""
        ncols = a.shape[1]
        if any(s != 0 for s in shifts):
            rp_ref[pmax:pmax + R, 0:ncols] = a           # stage once per conv
        parts = []
        for s in shifts:
            if s == 0:
                parts.append(a)                          # center tap: no scratch roundtrip
            else:
                win = rp_ref[pmax + s:pmax + s + R, 0:ncols]
                ok = jnp.logical_and(row_in_img + s >= 0, row_in_img + s < H)
                parts.append(jnp.where(ok, win, 0.0))
        op = parts[0] if len(parts) == 1 else jnp.concatenate(parts, axis=1)
        return jnp.dot(op.astype(bf16), w_ref_[...],
                       preferred_element_type=f32) + b_ref_[...]
        # TODO(synk): build the shifted windows fully in-register (pltpu.roll + mask)
        # to drop the remaining store->load dependency on the serial conv chain.

    x = x_ref[...]                                       # (R, Cin_pad*W) lane-dense f32

    # residual = LeakyReLU(Conv1x1(x))
    res = _leaky(conv(x, wres_ref, bres_ref, (0,)))

    # conv_i: BN scale is folded into w_i/b_i host-side (s_i > 0); only the shift t_i
    # remains as an in-kernel add.
    c1 = _leaky(conv(x, w1_ref, b1_ref, shifts1)) + t1_ref[...]
    c2 = _leaky(conv(c1, w2_ref, b2_ref, shifts2)) + t2_ref[...]
    c3 = _leaky(conv(c2, w3_ref, b3_ref, shifts3)) + t3_ref[...]

    # conv_4 over channel-concat(c1,c2,c3): lane concat == NCHW channel concat here.
    cat = jnp.concatenate([c1, c2, c3], axis=1)
    c4 = _leaky(jnp.dot(cat.astype(bf16), w4_ref[...],
                        preferred_element_type=f32) + b4_ref[...]) + t4_ref[...]

    conv_out = c4 + res
    convout_ref[...] = conv_out                          # lane-dense f32 store

    # Dropout2d: eval mode -> identity.
    # TODO(synk): training-mode Dropout2d RNG / batch-stat BatchNorm are not modeled.

    # AvgPool2d(3, stride=2, pad=1, count_include_pad=True): row window + stride-2 +
    # even/odd-row lane packing via two tiny matmuls, then per-channel column pooling
    # (incl. the 1/9) via blockdiag(P, P) -> the pooled store is a single unmasked,
    # 128-multiple-lane slab instead of a sub-128 masked vst.
    cvt = conv_out.astype(bf16)
    ye = jnp.dot(poolre_ref[...], cvt, preferred_element_type=f32)   # pooled rows 2j
    yo = jnp.dot(poolro_ref[...], cvt, preferred_element_type=f32)   # pooled rows 2j+1
    y = jnp.concatenate([ye, yo], axis=1).astype(bf16)               # (R/4, 2*Cout*W)
    pool_ref[...] = jnp.dot(y, poolp2_ref[...], preferred_element_type=f32)


# -----------------------------------------------------------------------------
# Host-side parameter lowering (done once).
# -----------------------------------------------------------------------------
def _lower_conv_w(w_hwio, dil, pad, W):
    """(kh, kw, Ci, Co) -> (kh, Ci*W, Co*W) block-Toeplitz matrices (W axis folded)."""
    kh, kw, Ci, Co = w_hwio.shape
    wi = jnp.arange(W)
    mats = []
    for i in range(kh):
        acc = jnp.zeros((Ci, W, Co, W), jnp.float32)
        for j in range(kw):
            sel = (wi[:, None] == wi[None, :] + j * dil - pad).astype(jnp.float32)
            acc = acc + jnp.einsum('cd,ab->cadb', w_hwio[i, j].astype(jnp.float32), sel)
        mats.append(acc.reshape(Ci * W, Co * W))
    return jnp.stack(mats)


def _tile_chan(v, W):
    """(1, C) per-channel vector -> (1, C*W) in fused (c*W + w) lane order."""
    return jnp.repeat(v.reshape(-1), W).reshape(1, -1).astype(jnp.float32)


def _pool_col_matrix(W, Cout):
    """Per-channel block-diagonal column-pooling matrix (Cout*W, Cout*(W//2)), incl 1/9."""
    w = jnp.arange(W)
    wo = jnp.arange(W // 2)
    pw = ((w[:, None] >= 2 * wo[None, :] - 1) &
          (w[:, None] <= 2 * wo[None, :] + 1)).astype(jnp.float32)
    P = jnp.einsum('cd,ab->cadb', jnp.eye(Cout, dtype=jnp.float32), pw)
    return P.reshape(Cout * W, Cout * (W // 2)) / 9.0


def _pool_row_matrices(H):
    """Row-pooling (+stride 2) matrices for even / odd pooled rows, each (H//4, H)."""
    h = jnp.arange(H)
    j = jnp.arange(H // 4)

    def mk(center0):
        ctr = 4 * j + center0
        return ((h[None, :] >= ctr[:, None] - 1) &
                (h[None, :] <= ctr[:, None] + 1)).astype(jnp.float32)

    return mk(0), mk(2)


def _pad_cin(cin, W):
    """Smallest Cin_pad >= cin with (Cin_pad * W) % 128 == 0."""
    g = 128 // math.gcd(W, 128)
    return ((cin + g - 1) // g) * g


def lower_params(p, H, W):
    """Fold W-axis taps, zero padding, BN scale and tap-fusion into bf16 matrices."""
    Cin, Cout = p["w1"].shape[2], p["w1"].shape[3]
    Cip = _pad_cin(Cin, W)
    bf16 = jnp.bfloat16

    # BN scale fold needs s = gamma/sqrt(var+eps) > 0 (leaky(s*z) == s*leaky(z)).
    for n in ("1", "2", "3", "4"):
        if float(jnp.min(p["s" + n])) <= 0.0:
            raise ValueError("BN scale fold requires positive per-channel scale")

    def pad_ci(w):
        kh, kw, ci, co = w.shape
        if ci == Cip:
            return w
        return jnp.concatenate([w, jnp.zeros((kh, kw, Cip - ci, co), w.dtype)], axis=2)

    def scale(w, s):
        return w * s.reshape(1, 1, 1, -1)

    def toep(w, dil, pad):
        m = _lower_conv_w(w, dil, pad, W)                 # (kh, Ci*W, Co*W)
        return m.reshape(m.shape[0] * m.shape[1], m.shape[2]).astype(bf16)

    # TODO(synk): W-tile these Toeplitz matrices (band is only kw*dil wide) before
    # scaling to full SalsaNext widths, where they grow quadratically in W.
    lp = {
        "wres": toep(pad_ci(p["w_res"]), 1, 0),
        "bres": _tile_chan(p["b_res"], W),
        "w1": toep(pad_ci(scale(p["w1"], p["s1"])), _CONV1[2], _CONV1[3]),
        "w2": toep(scale(p["w2"], p["s2"]), _CONV2[2], _CONV2[3]),
        "w3": toep(scale(p["w3"], p["s3"]), _CONV3[2], _CONV3[3]),
        "w4": toep(scale(p["w4"], p["s4"]), 1, 0),
    }
    for n in ("1", "2", "3", "4"):
        lp["b" + n] = _tile_chan(p["b" + n] * p["s" + n], W)   # bias picks up BN scale
        lp["t" + n] = _tile_chan(p["t" + n], W)                # BN shift stays additive

    CoutW = Cout * W
    P = _pool_col_matrix(W, Cout)
    P2 = jnp.zeros((2 * CoutW, CoutW), jnp.float32)
    P2 = P2.at[:CoutW, :CoutW // 2].set(P).at[CoutW:, CoutW // 2:].set(P)
    lp["poolP2"] = P2.astype(bf16)
    lp["poolRe"], lp["poolRo"] = _pool_row_matrices(H)         # per-image, f32
    return lp


# -----------------------------------------------------------------------------
# Forward wrapper
# -----------------------------------------------------------------------------
def _pick_nb(N, H, target_rows=256):
    """Images fused per grid step: fill MXU M-rows; keep >=2 steps for v7x megacore;
    keep every block's row count a multiple of 8 (or fall back to a single step)."""
    def ok_block(nb):
        return (nb * H) % 32 == 0 or N // nb == 1

    divs = [d for d in range(1, N + 1)
            if N % d == 0 and d * H <= max(H, target_rows) and ok_block(d)]
    multi = [d for d in divs if N // d >= 2]
    if multi:
        return multi[-1]
    return divs[-1] if divs else 1


def res_block_forward(x_nchw, lp, nb=None):
    """x: (N, Cin, H, W) NCHW -> (pooled NCHW, conv_out NCHW), eval-mode ResBlock."""
    N, Cin, H, W = x_nchw.shape
    CipW, CoutW = lp["wres"].shape
    Cip, Cout = CipW // W, CoutW // W
    assert H % 4 == 0 and W % 2 == 0, "pooling pack assumes H%4==0 and even W"
    if nb is None:
        nb = _pick_nb(N, H)
    assert N % nb == 0
    M, Hq = nb * H, H // 4
    cw_max = max(CipW, CoutW)

    # Pad input channels with zeros so Cin_pad*W is a multiple of 128 (full-lane
    # loads / K on the conv1+residual path); matching zero weight rows were folded in.
    x32 = x_nchw.astype(jnp.float32)
    if Cip > Cin:
        x32 = jnp.concatenate(
            [x32, jnp.zeros((N, Cip - Cin, H, W), jnp.float32)], axis=1)
    # NCHW -> fused (N*H, Cin_pad*W); W stays the minor axis, so this is cheap.
    x_f = jnp.transpose(x32, (0, 2, 1, 3)).reshape(N * H, CipW)

    # Block-diagonal (over the nb images of a step) row-pooling matrices.
    eye_nb = jnp.eye(nb, dtype=jnp.float32)
    poolre = jnp.kron(eye_nb, lp["poolRe"]).astype(jnp.bfloat16)   # (nb*H/4, nb*H)
    poolro = jnp.kron(eye_nb, lp["poolRo"]).astype(jnp.bfloat16)

    flat = [lp[k] for k in ("wres", "bres",
                            "w1", "b1", "t1", "w2", "b2", "t2",
                            "w3", "b3", "t3", "w4", "b4", "t4")]
    flat += [poolre, poolro, lp["poolP2"]]

    # TODO(synk): single-buffer these grid-invariant weights (pipeline_mode /
    # one-shot DMA into scratch) to halve their VMEM footprint on v7x.
    def rep_spec(a):
        return pl.BlockSpec(a.shape, lambda n: (0, 0))

    kernel = functools.partial(_res_block_kernel, H, PMAX,
                               _SHIFTS1, _SHIFTS2, _SHIFTS3)

    # Advisory cost for XLA scheduling around the custom call.
    flops_step = 2 * M * CoutW * (CipW + 3 * CipW + 3 * CoutW + 2 * CoutW + 3 * CoutW)
    flops_step += 2 * (M // 4) * M * CoutW * 2 + 2 * (M // 4) * (2 * CoutW) * CoutW
    bytes_w = sum(int(a.size) * a.dtype.itemsize for a in flat)
    ce = pl.CostEstimate(
        flops=int(flops_step * (N // nb)),
        transcendentals=0,
        bytes_accessed=int(x_f.size * 4 + N * H * CoutW * 4
                           + N * Hq * CoutW * 4 + bytes_w))

    conv_f, pool_f = pl.pallas_call(
        kernel,
        out_shape=(jax.ShapeDtypeStruct((N * H, CoutW), jnp.float32),
                   jax.ShapeDtypeStruct((N * Hq, CoutW), jnp.float32)),
        grid=(N // nb,),
        in_specs=[pl.BlockSpec((M, CipW), lambda n: (n, 0))]
                 + [rep_spec(a) for a in flat],
        out_specs=(pl.BlockSpec((M, CoutW), lambda n: (n, 0)),
                   pl.BlockSpec((nb * Hq, CoutW), lambda n: (n, 0))),
        scratch_shapes=[pltpu.VMEM((M + 2 * PMAX, cw_max), jnp.float32)],
        compiler_params=pltpu.CompilerParams(
            dimension_semantics=("parallel",),          # image groups independent
            vmem_limit_bytes=32 * 1024 * 1024),
        cost_estimate=ce,
    )(x_f, *flat)

    # fused -> NCHW (W stays minor; cheap).
    conv_out = conv_f.reshape(N, H, Cout, W).transpose(0, 2, 1, 3)
    pooled = (pool_f.reshape(N, Hq, 2, Cout, W // 2)
              .transpose(0, 3, 1, 2, 4).reshape(N, Cout, H // 2, W // 2))
    return pooled, conv_out


# -----------------------------------------------------------------------------
# Parameter init + pure-JAX reference for validation
# -----------------------------------------------------------------------------
def init_params(key, Cin, Cout):
    ks = jax.random.split(key, 16)

    def conv_w(k, kh, kw, ci, co):
        bound = 1.0 / jnp.sqrt(float(ci * kh * kw))
        return jax.random.uniform(k, (kh, kw, ci, co), jnp.float32, -bound, bound)

    def vec(k, c):
        return jax.random.uniform(k, (1, c), jnp.float32, -0.5, 0.5)

    p = {}
    p["w_res"] = conv_w(ks[0], 1, 1, Cin, Cout);      p["b_res"] = vec(ks[1], Cout)
    p["w1"] = conv_w(ks[2], 3, 3, Cin, Cout);         p["b1"] = vec(ks[3], Cout)
    p["w2"] = conv_w(ks[4], 3, 3, Cout, Cout);        p["b2"] = vec(ks[5], Cout)
    p["w3"] = conv_w(ks[6], 2, 2, Cout, Cout);        p["b3"] = vec(ks[7], Cout)
    p["w4"] = conv_w(ks[8], 1, 1, 3 * Cout, Cout);    p["b4"] = vec(ks[9], Cout)
    # Inference-mode BatchNorm2d folded into per-channel y = x * s + t (s > 0 here).
    for i, name in enumerate(("1", "2", "3", "4")):
        kg, kb, km, kv = jax.random.split(ks[10 + i], 4)
        gamma = 1.0 + 0.1 * jax.random.normal(kg, (Cout,), jnp.float32)
        beta = 0.1 * jax.random.normal(kb, (Cout,), jnp.float32)
        mean = 0.1 * jax.random.normal(km, (Cout,), jnp.float32)
        var = 0.5 + jax.random.uniform(kv, (Cout,), jnp.float32)
        s = gamma / jnp.sqrt(var + BN_EPS)
        t = beta - mean * s
        p["s" + name] = s[None, :]
        p["t" + name] = t[None, :]
    return p


def reference_forward(x_nchw, p):
    """Pure-JAX f32 reference (eval-mode ResBlock) for validation."""
    x = jnp.transpose(x_nchw, (0, 2, 3, 1)).astype(jnp.float32)
    dn = ("NHWC", "HWIO", "NHWC")

    def conv(a, w, b, pad, dil):
        y = lax.conv_general_dilated(a, w, window_strides=(1, 1),
                                     padding=[(pad, pad), (pad, pad)],
                                     rhs_dilation=(dil, dil),
                                     dimension_numbers=dn)
        return y + b[0][None, None, None, :]

    bn = lambda a, s, t: a * s[0] + t[0]
    residual = _leaky(conv(x, p["w_res"], p["b_res"], 0, 1))
    c1 = bn(_leaky(conv(x, p["w1"], p["b1"], 1, 1)), p["s1"], p["t1"])
    c2 = bn(_leaky(conv(c1, p["w2"], p["b2"], 2, 2)), p["s2"], p["t2"])
    c3 = bn(_leaky(conv(c2, p["w3"], p["b3"], 1, 2)), p["s3"], p["t3"])
    cat = jnp.concatenate([c1, c2, c3], axis=-1)
    c4 = bn(_leaky(conv(cat, p["w4"], p["b4"], 0, 1)), p["s4"], p["t4"])
    conv_out = c4 + residual
    summed = lax.reduce_window(conv_out, 0.0, lax.add,
                               (1, 3, 3, 1), (1, 2, 2, 1),
                               [(0, 0), (1, 1), (1, 1), (0, 0)])
    pooled = summed / 9.0
    return (jnp.transpose(pooled, (0, 3, 1, 2)),
            jnp.transpose(conv_out, (0, 3, 1, 2)))


if __name__ == "__main__":
    key = jax.random.PRNGKey(0)
    kx, kp = jax.random.split(key)
    # N=4 -> 2 images fused per grid step (M=32 matmul rows) x 2 parallel grid steps.
    N, Cin, Cout, H, W = 4, 4, 8, 16, 16

    x = jax.random.normal(kx, (N, Cin, H, W), jnp.float32)
    params = init_params(kp, Cin, Cout)
    lowered = lower_params(params, H, W)

    fwd = jax.jit(res_block_forward)
    out_pool, conv_out = fwd(x, lowered)
    jax.block_until_ready((out_pool, conv_out))

    ref_pool, ref_conv = reference_forward(x, params)
    assert out_pool.shape == (N, Cout, H // 2, W // 2), out_pool.shape
    assert conv_out.shape == (N, Cout, H, W), conv_out.shape
    # bf16 MXU operands -> compare with a bf16-appropriate tolerance.
    err_c = float(jnp.max(jnp.abs(conv_out - ref_conv)))
    err_p = float(jnp.max(jnp.abs(out_pool - ref_pool)))
    assert jnp.allclose(conv_out, ref_conv, atol=5e-2, rtol=5e-2), err_c
    assert jnp.allclose(out_pool, ref_pool, atol=5e-2, rtol=5e-2), err_p
    print("KERNEL_OK")
</pallas_src>

<mosaic_0001>
module attributes {stable_mosaic.version = 11 : i64} {
  func.func @_res_block_kernel(%arg0: i32, %arg1: memref<32x128xf32, #tpu.memory_space<vmem>>, %arg2: memref<128x128xbf16, #tpu.memory_space<vmem>>, %arg3: memref<1x128xf32, #tpu.memory_space<vmem>>, %arg4: memref<384x128xbf16, #tpu.memory_space<vmem>>, %arg5: memref<1x128xf32, #tpu.memory_space<vmem>>, %arg6: memref<1x128xf32, #tpu.memory_space<vmem>>, %arg7: memref<384x128xbf16, #tpu.memory_space<vmem>>, %arg8: memref<1x128xf32, #tpu.memory_space<vmem>>, %arg9: memref<1x128xf32, #tpu.memory_space<vmem>>, %arg10: memref<256x128xbf16, #tpu.memory_space<vmem>>, %arg11: memref<1x128xf32, #tpu.memory_space<vmem>>, %arg12: memref<1x128xf32, #tpu.memory_space<vmem>>, %arg13: memref<384x128xbf16, #tpu.memory_space<vmem>>, %arg14: memref<1x128xf32, #tpu.memory_space<vmem>>, %arg15: memref<1x128xf32, #tpu.memory_space<vmem>>, %arg16: memref<8x32xbf16, #tpu.memory_space<vmem>>, %arg17: memref<8x32xbf16, #tpu.memory_space<vmem>>, %arg18: memref<256x128xbf16, #tpu.memory_space<vmem>>, %arg19: memref<32x128xf32, #tpu.memory_space<vmem>>, %arg20: memref<8x128xf32, #tpu.memory_space<vmem>>, %arg21: memref<36x128xf32, #tpu.memory_space<vmem>>) attributes {dimension_semantics = [#tpu.dimension_semantics<parallel>], iteration_bounds = array<i64: 2>, scalar_prefetch = 0 : i64, scratch_operands = 1 : i64, tpu.core_type = #tpu.core_type<tc>, window_params = [{transform_indices = @transform_0, window_bounds = array<i64: 32, 128>}, {pipeline_mode = #tpu.pipeline_mode<synchronous>, transform_indices = @transform_1, window_bounds = array<i64: 128, 128>}, {pipeline_mode = #tpu.pipeline_mode<synchronous>, transform_indices = @transform_2, window_bounds = array<i64: 1, 128>}, {pipeline_mode = #tpu.pipeline_mode<synchronous>, transform_indices = @transform_3, window_bounds = array<i64: 384, 128>}, {pipeline_mode = #tpu.pipeline_mode<synchronous>, transform_indices = @transform_4, window_bounds = array<i64: 1, 128>}, {pipeline_mode = #tpu.pipeline_mode<synchronous>, transform_indices = @transform_5, window_bounds = array<i64: 1, 128>}, {pipeline_mode = #tpu.pipeline_mode<synchronous>, transform_indices = @transform_6, window_bounds = array<i64: 384, 128>}, {pipeline_mode = #tpu.pipeline_mode<synchronous>, transform_indices = @transform_7, window_bounds = array<i64: 1, 128>}, {pipeline_mode = #tpu.pipeline_mode<synchronous>, transform_indices = @transform_8, window_bounds = array<i64: 1, 128>}, {pipeline_mode = #tpu.pipeline_mode<synchronous>, transform_indices = @transform_9, window_bounds = array<i64: 256, 128>}, {pipeline_mode = #tpu.pipeline_mode<synchronous>, transform_indices = @transform_10, window_bounds = array<i64: 1, 128>}, {pipeline_mode = #tpu.pipeline_mode<synchronous>, transform_indices = @transform_11, window_bounds = array<i64: 1, 128>}, {pipeline_mode = #tpu.pipeline_mode<synchronous>, transform_indices = @transform_12, window_bounds = array<i64: 384, 128>}, {pipeline_mode = #tpu.pipeline_mode<synchronous>, transform_indices = @transform_13, window_bounds = array<i64: 1, 128>}, {pipeline_mode = #tpu.pipeline_mode<synchronous>, transform_indices = @transform_14, window_bounds = array<i64: 1, 128>}, {pipeline_mode = #tpu.pipeline_mode<synchronous>, transform_indices = @transform_15, window_bounds = array<i64: 8, 32>}, {pipeline_mode = #tpu.pipeline_mode<synchronous>, transform_indices = @transform_16, window_bounds = array<i64: 8, 32>}, {pipeline_mode = #tpu.pipeline_mode<synchronous>, transform_indices = @transform_17, window_bounds = array<i64: 256, 128>}, {transform_indices = @transform_18, window_bounds = array<i64: 32, 128>}, {transform_indices = @transform_19, window_bounds = array<i64: 8, 128>}]} {
    %0 = tpu.iota {dimensions = array<i32: 0>} : vector<32x1xi32>
    %c16_i32 = arith.constant 16 : i32
    %c0_i32 = arith.constant 0 : i32
    %1 = arith.cmpi eq, %c16_i32, %c0_i32 : i32
    %c1_i32 = arith.constant 1 : i32
    %2 = arith.select %1, %c1_i32, %c16_i32 : i32
    %3 = vector.broadcast %2 : i32 to vector<32x1xi32>
    %4 = arith.remsi %0, %3 : vector<32x1xi32>
    %c0_i32_0 = arith.constant 0 : i32
    %5 = vector.broadcast %c0_i32_0 : i32 to vector<32x1xi32>
    %6 = arith.cmpi ne, %4, %5 : vector<32x1xi32>
    %c0_i32_1 = arith.constant 0 : i32
    %7 = vector.broadcast %c0_i32_1 : i32 to vector<32x1xi32>
    %8 = arith.cmpi slt, %4, %7 : vector<32x1xi32>
    %c0_i32_2 = arith.constant 0 : i32
    %9 = arith.cmpi slt, %2, %c0_i32_2 : i32
    %10 = vector.broadcast %9 : i1 to vector<32x1xi1>
    %11 = vector.broadcast %10 : vector<32x1xi1> to vector<32x1xi1>
    %12 = arith.xori %8, %11 : vector<32x1xi1>
    %13 = arith.andi %12, %6 : vector<32x1xi1>
    %14 = vector.broadcast %2 : i32 to vector<32x1xi32>
    %15 = arith.addi %4, %14 : vector<32x1xi32>
    %16 = arith.select %13, %15, %4 : vector<32x1xi1>, vector<32x1xi32>
    %c0 = arith.constant 0 : index
    %c0_3 = arith.constant 0 : index
    %17 = vector.load %arg1[%c0, %c0_3] : memref<32x128xf32, #tpu.memory_space<vmem>>, vector<32x128xf32>
    %18 = arith.truncf %17 : vector<32x128xf32> to vector<32x128xbf16>
    %c0_4 = arith.constant 0 : index
    %c0_5 = arith.constant 0 : index
    %19 = vector.load %arg2[%c0_4, %c0_5] : memref<128x128xbf16, #tpu.memory_space<vmem>>, vector<128x128xbf16>
    %cst = arith.constant dense<0.000000e+00> : vector<32x128xf32>
    %20 = tpu.matmul %18, %19, %cst {dimension_numbers = #tpu.dot_dimension_numbers<[1], [0], [0], [1], [0, 0, 1, 1], [], []>} : vector<32x128xbf16>, vector<128x128xbf16>, vector<32x128xf32> -> vector<32x128xf32>
    %c0_6 = arith.constant 0 : index
    %c0_7 = arith.constant 0 : index
    %21 = vector.load %arg3[%c0_6, %c0_7] : memref<1x128xf32, #tpu.memory_space<vmem>>, vector<1x128xf32>
    %22 = vector.broadcast %21 : vector<1x128xf32> to vector<32x128xf32>
    %23 = arith.addf %20, %22 : vector<32x128xf32>
    %cst_8 = arith.constant 0.00999999977 : f32
    %24 = vector.broadcast %cst_8 : f32 to vector<32x128xf32>
    %25 = arith.mulf %24, %23 : vector<32x128xf32>
    %26 = arith.maximumf %23, %25 : vector<32x128xf32>
    %c2 = arith.constant 2 : index
    %c0_9 = arith.constant 0 : index
    %27 = vector.load %arg21[%c2, %c0_9] : memref<36x128xf32, #tpu.memory_space<vmem>>, vector<32x128xf32>
    tpu.vector_store %arg21[%c2, %c0_9], %17 {strides = array<i32>} : memref<36x128xf32, #tpu.memory_space<vmem>>, vector<32x128xf32>,
    %c1 = arith.constant 1 : index
    %c0_10 = arith.constant 0 : index
    %28 = vector.load %arg21[%c1, %c0_10] : memref<36x128xf32, #tpu.memory_space<vmem>>, vector<32x128xf32>
    %c-1_i32 = arith.constant -1 : i32
    %29 = vector.broadcast %c-1_i32 : i32 to vector<32x1xi32>
    %30 = arith.addi %16, %29 : vector<32x1xi32>
    %c0_i32_11 = arith.constant 0 : i32
    %31 = vector.broadcast %c0_i32_11 : i32 to vector<32x1xi32>
    %32 = arith.cmpi sge, %30, %31 : vector<32x1xi32>
    %c-1_i32_12 = arith.constant -1 : i32
    %33 = vector.broadcast %c-1_i32_12 : i32 to vector<32x1xi32>
    %34 = arith.addi %16, %33 : vector<32x1xi32>
    %c16_i32_13 = arith.constant 16 : i32
    %35 = vector.broadcast %c16_i32_13 : i32 to vector<32x1xi32>
    %36 = arith.cmpi slt, %34, %35 : vector<32x1xi32>
    %37 = arith.andi %32, %36 : vector<32x1xi1>
    %cst_14 = arith.constant 0.000000e+00 : f32
    %38 = vector.shape_cast %37 : vector<32x1xi1> to vector<32x1xi1>
    %39 = vector.broadcast %38 : vector<32x1xi1> to vector<32x128xi1>
    %40 = vector.broadcast %cst_14 : f32 to vector<32x128xf32>
    %41 = arith.select %39, %28, %40 : vector<32x128xi1>, vector<32x128xf32>
    %c3 = arith.constant 3 : index
    %c0_15 = arith.constant 0 : index
    %42 = vector.load %arg21[%c3, %c0_15] : memref<36x128xf32, #tpu.memory_space<vmem>>, vector<32x128xf32>
    %c1_i32_16 = arith.constant 1 : i32
    %43 = vector.broadcast %c1_i32_16 : i32 to vector<32x1xi32>
    %44 = arith.addi %16, %43 : vector<32x1xi32>
    %c0_i32_17 = arith.constant 0 : i32
    %45 = vector.broadcast %c0_i32_17 : i32 to vector<32x1xi32>
    %46 = arith.cmpi sge, %44, %45 : vector<32x1xi32>
    %c1_i32_18 = arith.constant 1 : i32
    %47 = vector.broadcast %c1_i32_18 : i32 to vector<32x1xi32>
    %48 = arith.addi %16, %47 : vector<32x1xi32>
    %c16_i32_19 = arith.constant 16 : i32
    %49 = vector.broadcast %c16_i32_19 : i32 to vector<32x1xi32>
    %50 = arith.cmpi slt, %48, %49 : vector<32x1xi32>
    %51 = arith.andi %46, %50 : vector<32x1xi1>
    %cst_20 = arith.constant 0.000000e+00 : f32
    %52 = vector.shape_cast %51 : vector<32x1xi1> to vector<32x1xi1>
    %53 = vector.broadcast %52 : vector<32x1xi1> to vector<32x128xi1>
    %54 = vector.broadcast %cst_20 : f32 to vector<32x128xf32>
    %55 = arith.select %53, %42, %54 : vector<32x128xi1>, vector<32x128xf32>
    %56 = tpu.concatenate %41, %17, %55 in 1 : vector<32x128xf32>, vector<32x128xf32>, vector<32x128xf32> -> vector<32x384xf32>
    %57 = arith.truncf %56 : vector<32x384xf32> to vector<32x384xbf16>
    %c0_21 = arith.constant 0 : index
    %c0_22 = arith.constant 0 : index
    %58 = vector.load %arg4[%c0_21, %c0_22] : memref<384x128xbf16, #tpu.memory_space<vmem>>, vector<384x128xbf16>
    %cst_23 = arith.constant dense<0.000000e+00> : vector<32x128xf32>
    %59 = tpu.matmul %57, %58, %cst_23 {dimension_numbers = #tpu.dot_dimension_numbers<[1], [0], [0], [1], [0, 0, 1, 1], [], []>} : vector<32x384xbf16>, vector<384x128xbf16>, vector<32x128xf32> -> vector<32x128xf32>
    %c0_24 = arith.constant 0 : index
    %c0_25 = arith.constant 0 : index
    %60 = vector.load %arg5[%c0_24, %c0_25] : memref<1x128xf32, #tpu.memory_space<vmem>>, vector<1x128xf32>
    %61 = vector.broadcast %60 : vector<1x128xf32> to vector<32x128xf32>
    %62 = arith.addf %59, %61 : vector<32x128xf32>
    %cst_26 = arith.constant 0.00999999977 : f32
    %63 = vector.broadcast %cst_26 : f32 to vector<32x128xf32>
    %64 = arith.mulf %63, %62 : vector<32x128xf32>
    %65 = arith.maximumf %62, %64 : vector<32x128xf32>
    %c0_27 = arith.constant 0 : index
    %c0_28 = arith.constant 0 : index
    %66 = vector.load %arg6[%c0_27, %c0_28] : memref<1x128xf32, #tpu.memory_space<vmem>>, vector<1x128xf32>
    %67 = vector.broadcast %66 : vector<1x128xf32> to vector<32x128xf32>
    %68 = arith.addf %65, %67 : vector<32x128xf32>
    %c2_29 = arith.constant 2 : index
    %c0_30 = arith.constant 0 : index
    %69 = vector.load %arg21[%c2_29, %c0_30] : memref<36x128xf32, #tpu.memory_space<vmem>>, vector<32x128xf32>
    tpu.vector_store %arg21[%c2_29, %c0_30], %68 {strides = array<i32>} : memref<36x128xf32, #tpu.memory_space<vmem>>, vector<32x128xf32>,
    %c0_31 = arith.constant 0 : index
    %c0_32 = arith.constant 0 : index
    %70 = vector.load %arg21[%c0_31, %c0_32] : memref<36x128xf32, #tpu.memory_space<vmem>>, vector<32x128xf32>
    %c-2_i32 = arith.constant -2 : i32
    %71 = vector.broadcast %c-2_i32 : i32 to vector<32x1xi32>
    %72 = arith.addi %16, %71 : vector<32x1xi32>
    %c0_i32_33 = arith.constant 0 : i32
    %73 = vector.broadcast %c0_i32_33 : i32 to vector<32x1xi32>
    %74 = arith.cmpi sge, %72, %73 : vector<32x1xi32>
    %c-2_i32_34 = arith.constant -2 : i32
    %75 = vector.broadcast %c-2_i32_34 : i32 to vector<32x1xi32>
    %76 = arith.addi %16, %75 : vector<32x1xi32>
    %c16_i32_35 = arith.constant 16 : i32
    %77 = vector.broadcast %c16_i32_35 : i32 to vector<32x1xi32>
    %78 = arith.cmpi slt, %76, %77 : vector<32x1xi32>
    %79 = arith.andi %74, %78 : vector<32x1xi1>
    %cst_36 = arith.constant 0.000000e+00 : f32
    %80 = vector.shape_cast %79 : vector<32x1xi1> to vector<32x1xi1>
    %81 = vector.broadcast %80 : vector<32x1xi1> to vector<32x128xi1>
    %82 = vector.broadcast %cst_36 : f32 to vector<32x128xf32>
    %83 = arith.select %81, %70, %82 : vector<32x128xi1>, vector<32x128xf32>
    %c4 = arith.constant 4 : index
    %c0_37 = arith.constant 0 : index
    %84 = vector.load %arg21[%c4, %c0_37] : memref<36x128xf32, #tpu.memory_space<vmem>>, vector<32x128xf32>
    %c2_i32 = arith.constant 2 : i32
    %85 = vector.broadcast %c2_i32 : i32 to vector<32x1xi32>
    %86 = arith.addi %16, %85 : vector<32x1xi32>
    %c0_i32_38 = arith.constant 0 : i32
    %87 = vector.broadcast %c0_i32_38 : i32 to vector<32x1xi32>
    %88 = arith.cmpi sge, %86, %87 : vector<32x1xi32>
    %c2_i32_39 = arith.constant 2 : i32
    %89 = vector.broadcast %c2_i32_39 : i32 to vector<32x1xi32>
    %90 = arith.addi %16, %89 : vector<32x1xi32>
    %c16_i32_40 = arith.constant 16 : i32
    %91 = vector.broadcast %c16_i32_40 : i32 to vector<32x1xi32>
    %92 = arith.cmpi slt, %90, %91 : vector<32x1xi32>
    %93 = arith.andi %88, %92 : vector<32x1xi1>
    %cst_41 = arith.constant 0.000000e+00 : f32
    %94 = vector.shape_cast %93 : vector<32x1xi1> to vector<32x1xi1>
    %95 = vector.broadcast %94 : vector<32x1xi1> to vector<32x128xi1>
    %96 = vector.broadcast %cst_41 : f32 to vector<32x128xf32>
    %97 = arith.select %95, %84, %96 : vector<32x128xi1>, vector<32x128xf32>
    %98 = tpu.concatenate %83, %68, %97 in 1 : vector<32x128xf32>, vector<32x128xf32>, vector<32x128xf32> -> vector<32x384xf32>
    %99 = arith.truncf %98 : vector<32x384xf32> to vector<32x384xbf16>
    %c0_42 = arith.constant 0 : index
    %c0_43 = arith.constant 0 : index
    %100 = vector.load %arg7[%c0_42, %c0_43] : memref<384x128xbf16, #tpu.memory_space<vmem>>, vector<384x128xbf16>
    %cst_44 = arith.constant dense<0.000000e+00> : vector<32x128xf32>
    %101 = tpu.matmul %99, %100, %cst_44 {dimension_numbers = #tpu.dot_dimension_numbers<[1], [0], [0], [1], [0, 0, 1, 1], [], []>} : vector<32x384xbf16>, vector<384x128xbf16>, vector<32x128xf32> -> vector<32x128xf32>
    %c0_45 = arith.constant 0 : index
    %c0_46 = arith.constant 0 : index
    %102 = vector.load %arg8[%c0_45, %c0_46] : memref<1x128xf32, #tpu.memory_space<vmem>>, vector<1x128xf32>
    %103 = vector.broadcast %102 : vector<1x128xf32> to vector<32x128xf32>
    %104 = arith.addf %101, %103 : vector<32x128xf32>
    %cst_47 = arith.constant 0.00999999977 : f32
    %105 = vector.broadcast %cst_47 : f32 to vector<32x128xf32>
    %106 = arith.mulf %105, %104 : vector<32x128xf32>
    %107 = arith.maximumf %104, %106 : vector<32x128xf32>
    %c0_48 = arith.constant 0 : index
    %c0_49 = arith.constant 0 : index
    %108 = vector.load %arg9[%c0_48, %c0_49] : memref<1x128xf32, #tpu.memory_space<vmem>>, vector<1x128xf32>
    %109 = vector.broadcast %108 : vector<1x128xf32> to vector<32x128xf32>
    %110 = arith.addf %107, %109 : vector<32x128xf32>
    %c2_50 = arith.constant 2 : index
    %c0_51 = arith.constant 0 : index
    %111 = vector.load %arg21[%c2_50, %c0_51] : memref<36x128xf32, #tpu.memory_space<vmem>>, vector<32x128xf32>
    tpu.vector_store %arg21[%c2_50, %c0_51], %110 {strides = array<i32>} : memref<36x128xf32, #tpu.memory_space<vmem>>, vector<32x128xf32>,
    %c1_52 = arith.constant 1 : index
    %c0_53 = arith.constant 0 : index
    %112 = vector.load %arg21[%c1_52, %c0_53] : memref<36x128xf32, #tpu.memory_space<vmem>>, vector<32x128xf32>
    %c-1_i32_54 = arith.constant -1 : i32
    %113 = vector.broadcast %c-1_i32_54 : i32 to vector<32x1xi32>
    %114 = arith.addi %16, %113 : vector<32x1xi32>
    %c0_i32_55 = arith.constant 0 : i32
    %115 = vector.broadcast %c0_i32_55 : i32 to vector<32x1xi32>
    %116 = arith.cmpi sge, %114, %115 : vector<32x1xi32>
    %c-1_i32_56 = arith.constant -1 : i32
    %117 = vector.broadcast %c-1_i32_56 : i32 to vector<32x1xi32>
    %118 = arith.addi %16, %117 : vector<32x1xi32>
    %c16_i32_57 = arith.constant 16 : i32
    %119 = vector.broadcast %c16_i32_57 : i32 to vector<32x1xi32>
    %120 = arith.cmpi slt, %118, %119 : vector<32x1xi32>
    %121 = arith.andi %116, %120 : vector<32x1xi1>
    %cst_58 = arith.constant 0.000000e+00 : f32
    %122 = vector.shape_cast %121 : vector<32x1xi1> to vector<32x1xi1>
    %123 = vector.broadcast %122 : vector<32x1xi1> to vector<32x128xi1>
    %124 = vector.broadcast %cst_58 : f32 to vector<32x128xf32>
    %125 = arith.select %123, %112, %124 : vector<32x128xi1>, vector<32x128xf32>
    %c3_59 = arith.constant 3 : index
    %c0_60 = arith.constant 0 : index
    %126 = vector.load %arg21[%c3_59, %c0_60] : memref<36x128xf32, #tpu.memory_space<vmem>>, vector<32x128xf32>
    %c1_i32_61 = arith.constant 1 : i32
    %127 = vector.broadcast %c1_i32_61 : i32 to vector<32x1xi32>
    %128 = arith.addi %16, %127 : vector<32x1xi32>
    %c0_i32_62 = arith.constant 0 : i32
    %129 = vector.broadcast %c0_i32_62 : i32 to vector<32x1xi32>
    %130 = arith.cmpi sge, %128, %129 : vector<32x1xi32>
    %c1_i32_63 = arith.constant 1 : i32
    %131 = vector.broadcast %c1_i32_63 : i32 to vector<32x1xi32>
    %132 = arith.addi %16, %131 : vector<32x1xi32>
    %c16_i32_64 = arith.constant 16 : i32
    %133 = vector.broadcast %c16_i32_64 : i32 to vector<32x1xi32>
    %134 = arith.cmpi slt, %132, %133 : vector<32x1xi32>
    %135 = arith.andi %130, %134 : vector<32x1xi1>
    %cst_65 = arith.constant 0.000000e+00 : f32
    %136 = vector.shape_cast %135 : vector<32x1xi1> to vector<32x1xi1>
    %137 = vector.broadcast %136 : vector<32x1xi1> to vector<32x128xi1>
    %138 = vector.broadcast %cst_65 : f32 to vector<32x128xf32>
    %139 = arith.select %137, %126, %138 : vector<32x128xi1>, vector<32x128xf32>
    %140 = tpu.concatenate %125, %139 in 1 : vector<32x128xf32>, vector<32x128xf32> -> vector<32x256xf32>
    %141 = arith.truncf %140 : vector<32x256xf32> to vector<32x256xbf16>
    %c0_66 = arith.constant 0 : index
    %c0_67 = arith.constant 0 : index
    %142 = vector.load %arg10[%c0_66, %c0_67] : memref<256x128xbf16, #tpu.memory_space<vmem>>, vector<256x128xbf16>
    %cst_68 = arith.constant dense<0.000000e+00> : vector<32x128xf32>
    %143 = tpu.matmul %141, %142, %cst_68 {dimension_numbers = #tpu.dot_dimension_numbers<[1], [0], [0], [1], [0, 0, 1, 1], [], []>} : vector<32x256xbf16>, vector<256x128xbf16>, vector<32x128xf32> -> vector<32x128xf32>
    %c0_69 = arith.constant 0 : index
    %c0_70 = arith.constant 0 : index
    %144 = vector.load %arg11[%c0_69, %c0_70] : memref<1x128xf32, #tpu.memory_space<vmem>>, vector<1x128xf32>
    %145 = vector.broadcast %144 : vector<1x128xf32> to vector<32x128xf32>
    %146 = arith.addf %143, %145 : vector<32x128xf32>
    %cst_71 = arith.constant 0.00999999977 : f32
    %147 = vector.broadcast %cst_71 : f32 to vector<32x128xf32>
    %148 = arith.mulf %147, %146 : vector<32x128xf32>
    %149 = arith.maximumf %146, %148 : vector<32x128xf32>
    %c0_72 = arith.constant 0 : index
    %c0_73 = arith.constant 0 : index
    %150 = vector.load %arg12[%c0_72, %c0_73] : memref<1x128xf32, #tpu.memory_space<vmem>>, vector<1x128xf32>
    %151 = vector.broadcast %150 : vector<1x128xf32> to vector<32x128xf32>
    %152 = arith.addf %149, %151 : vector<32x128xf32>
    %153 = tpu.concatenate %68, %110, %152 in 1 : vector<32x128xf32>, vector<32x128xf32>, vector<32x128xf32> -> vector<32x384xf32>
    %154 = arith.truncf %153 : vector<32x384xf32> to vector<32x384xbf16>
    %c0_74 = arith.constant 0 : index
    %c0_75 = arith.constant 0 : index
    %155 = vector.load %arg13[%c0_74, %c0_75] : memref<384x128xbf16, #tpu.memory_space<vmem>>, vector<384x128xbf16>
    %cst_76 = arith.constant dense<0.000000e+00> : vector<32x128xf32>
    %156 = tpu.matmul %154, %155, %cst_76 {dimension_numbers = #tpu.dot_dimension_numbers<[1], [0], [0], [1], [0, 0, 1, 1], [], []>} : vector<32x384xbf16>, vector<384x128xbf16>, vector<32x128xf32> -> vector<32x128xf32>
    %c0_77 = arith.constant 0 : index
    %c0_78 = arith.constant 0 : index
    %157 = vector.load %arg14[%c0_77, %c0_78] : memref<1x128xf32, #tpu.memory_space<vmem>>, vector<1x128xf32>
    %158 = vector.broadcast %157 : vector<1x128xf32> to vector<32x128xf32>
    %159 = arith.addf %156, %158 : vector<32x128xf32>
    %cst_79 = arith.constant 0.00999999977 : f32
    %160 = vector.broadcast %cst_79 : f32 to vector<32x128xf32>
    %161 = arith.mulf %160, %159 : vector<32x128xf32>
    %162 = arith.maximumf %159, %161 : vector<32x128xf32>
    %c0_80 = arith.constant 0 : index
    %c0_81 = arith.constant 0 : index
    %163 = vector.load %arg15[%c0_80, %c0_81] : memref<1x128xf32, #tpu.memory_space<vmem>>, vector<1x128xf32>
    %164 = vector.broadcast %163 : vector<1x128xf32> to vector<32x128xf32>
    %165 = arith.addf %162, %164 : vector<32x128xf32>
    %166 = arith.addf %165, %26 : vector<32x128xf32>
    %c0_82 = arith.constant 0 : index
    %c0_83 = arith.constant 0 : index
    %167 = vector.load %arg19[%c0_82, %c0_83] : memref<32x128xf32, #tpu.memory_space<vmem>>, vector<32x128xf32>
    tpu.vector_store %arg19[%c0_82, %c0_83], %166 {strides = array<i32>} : memref<32x128xf32, #tpu.memory_space<vmem>>, vector<32x128xf32>,
    %168 = arith.truncf %166 : vector<32x128xf32> to vector<32x128xbf16>
    %c0_84 = arith.constant 0 : index
    %c0_85 = arith.constant 0 : index
    %169 = vector.load %arg16[%c0_84, %c0_85] : memref<8x32xbf16, #tpu.memory_space<vmem>>, vector<8x32xbf16>
    %cst_86 = arith.constant dense<0.000000e+00> : vector<8x128xf32>
    %170 = tpu.matmul %169, %168, %cst_86 {dimension_numbers = #tpu.dot_dimension_numbers<[1], [0], [0], [1], [0, 0, 1, 1], [], []>} : vector<8x32xbf16>, vector<32x128xbf16>, vector<8x128xf32> -> vector<8x128xf32>
    %c0_87 = arith.constant 0 : index
    %c0_88 = arith.constant 0 : index
    %171 = vector.load %arg17[%c0_87, %c0_88] : memref<8x32xbf16, #tpu.memory_space<vmem>>, vector<8x32xbf16>
    %cst_89 = arith.constant dense<0.000000e+00> : vector<8x128xf32>
    %172 = tpu.matmul %171, %168, %cst_89 {dimension_numbers = #tpu.dot_dimension_numbers<[1], [0], [0], [1], [0, 0, 1, 1], [], []>} : vector<8x32xbf16>, vector<32x128xbf16>, vector<8x128xf32> -> vector<8x128xf32>
    %173 = tpu.concatenate %170, %172 in 1 : vector<8x128xf32>, vector<8x128xf32> -> vector<8x256xf32>
    %174 = arith.truncf %173 : vector<8x256xf32> to vector<8x256xbf16>
    %c0_90 = arith.constant 0 : index
    %c0_91 = arith.constant 0 : index
    %175 = vector.load %arg18[%c0_90, %c0_91] : memref<256x128xbf16, #tpu.memory_space<vmem>>, vector<256x128xbf16>
    %cst_92 = arith.constant dense<0.000000e+00> : vector<8x128xf32>
    %176 = tpu.matmul %174, %175, %cst_92 {dimension_numbers = #tpu.dot_dimension_numbers<[1], [0], [0], [1], [0, 0, 1, 1], [], []>} : vector<8x256xbf16>, vector<256x128xbf16>, vector<8x128xf32> -> vector<8x128xf32>
    %c0_93 = arith.constant 0 : index
    %c0_94 = arith.constant 0 : index
    %177 = vector.load %arg20[%c0_93, %c0_94] : memref<8x128xf32, #tpu.memory_space<vmem>>, vector<8x128xf32>
    tpu.vector_store %arg20[%c0_93, %c0_94], %176 {strides = array<i32>} : memref<8x128xf32, #tpu.memory_space<vmem>>, vector<8x128xf32>,
    return
  }
  func.func @transform_0(%arg0: i32) -> (i32, i32) {
    %c0_i32 = arith.constant 0 : i32
    %c0_i32_0 = arith.constant 0 : i32
    return %arg0, %c0_i32 : i32, i32
  }
  func.func @transform_1(%arg0: i32) -> (i32, i32) {
    %c0_i32 = arith.constant 0 : i32
    %c0_i32_0 = arith.constant 0 : i32
    %c0_i32_1 = arith.constant 0 : i32
    return %c0_i32, %c0_i32_0 : i32, i32
  }
  func.func @transform_2(%arg0: i32) -> (i32, i32) {
    %c0_i32 = arith.constant 0 : i32
    %c0_i32_0 = arith.constant 0 : i32
    %c0_i32_1 = arith.constant 0 : i32
    return %c0_i32, %c0_i32_0 : i32, i32
  }
  func.func @transform_3(%arg0: i32) -> (i32, i32) {
    %c0_i32 = arith.constant 0 : i32
    %c0_i32_0 = arith.constant 0 : i32
    %c0_i32_1 = arith.constant 0 : i32
    return %c0_i32, %c0_i32_0 : i32, i32
  }
  func.func @transform_4(%arg0: i32) -> (i32, i32) {
    %c0_i32 = arith.constant 0 : i32
    %c0_i32_0 = arith.constant 0 : i32
    %c0_i32_1 = arith.constant 0 : i32
    return %c0_i32, %c0_i32_0 : i32, i32
  }
  func.func @transform_5(%arg0: i32) -> (i32, i32) {
    %c0_i32 = arith.constant 0 : i32
    %c0_i32_0 = arith.constant 0 : i32
    %c0_i32_1 = arith.constant 0 : i32
    return %c0_i32, %c0_i32_0 : i32, i32
  }
  func.func @transform_6(%arg0: i32) -> (i32, i32) {
    %c0_i32 = arith.constant 0 : i32
    %c0_i32_0 = arith.constant 0 : i32
    %c0_i32_1 = arith.constant 0 : i32
    return %c0_i32, %c0_i32_0 : i32, i32
  }
  func.func @transform_7(%arg0: i32) -> (i32, i32) {
    %c0_i32 = arith.constant 0 : i32
    %c0_i32_0 = arith.constant 0 : i32
    %c0_i32_1 = arith.constant 0 : i32
    return %c0_i32, %c0_i32_0 : i32, i32
  }
  func.func @transform_8(%arg0: i32) -> (i32, i32) {
    %c0_i32 = arith.constant 0 : i32
    %c0_i32_0 = arith.constant 0 : i32
    %c0_i32_1 = arith.constant 0 : i32
    return %c0_i32, %c0_i32_0 : i32, i32
  }
  func.func @transform_9(%arg0: i32) -> (i32, i32) {
    %c0_i32 = arith.constant 0 : i32
    %c0_i32_0 = arith.constant 0 : i32
    %c0_i32_1 = arith.constant 0 : i32
    return %c0_i32, %c0_i32_0 : i32, i32
  }
  func.func @transform_10(%arg0: i32) -> (i32, i32) {
    %c0_i32 = arith.constant 0 : i32
    %c0_i32_0 = arith.constant 0 : i32
    %c0_i32_1 = arith.constant 0 : i32
    return %c0_i32, %c0_i32_0 : i32, i32
  }
  func.func @transform_11(%arg0: i32) -> (i32, i32) {
    %c0_i32 = arith.constant 0 : i32
    %c0_i32_0 = arith.constant 0 : i32
    %c0_i32_1 = arith.constant 0 : i32
    return %c0_i32, %c0_i32_0 : i32, i32
  }
  func.func @transform_12(%arg0: i32) -> (i32, i32) {
    %c0_i32 = arith.constant 0 : i32
    %c0_i32_0 = arith.constant 0 : i32
    %c0_i32_1 = arith.constant 0 : i32
    return %c0_i32, %c0_i32_0 : i32, i32
  }
  func.func @transform_13(%arg0: i32) -> (i32, i32) {
    %c0_i32 = arith.constant 0 : i32
    %c0_i32_0 = arith.constant 0 : i32
    %c0_i32_1 = arith.constant 0 : i32
    return %c0_i32, %c0_i32_0 : i32, i32
  }
  func.func @transform_14(%arg0: i32) -> (i32, i32) {
    %c0_i32 = arith.constant 0 : i32
    %c0_i32_0 = arith.constant 0 : i32
    %c0_i32_1 = arith.constant 0 : i32
    return %c0_i32, %c0_i32_0 : i32, i32
  }
  func.func @transform_15(%arg0: i32) -> (i32, i32) {
    %c0_i32 = arith.constant 0 : i32
    %c0_i32_0 = arith.constant 0 : i32
    %c0_i32_1 = arith.constant 0 : i32
    return %c0_i32, %c0_i32_0 : i32, i32
  }
  func.func @transform_16(%arg0: i32) -> (i32, i32) {
    %c0_i32 = arith.constant 0 : i32
    %c0_i32_0 = arith.constant 0 : i32
    %c0_i32_1 = arith.constant 0 : i32
    return %c0_i32, %c0_i32_0 : i32, i32
  }
  func.func @transform_17(%arg0: i32) -> (i32, i32) {
    %c0_i32 = arith.constant 0 : i32
    %c0_i32_0 = arith.constant 0 : i32
    %c0_i32_1 = arith.constant 0 : i32
    return %c0_i32, %c0_i32_0 : i32, i32
  }
  func.func @transform_18(%arg0: i32) -> (i32, i32) {
    %c0_i32 = arith.constant 0 : i32
    %c0_i32_0 = arith.constant 0 : i32
    return %arg0, %c0_i32 : i32, i32
  }
  func.func @transform_19(%arg0: i32) -> (i32, i32) {
    %c0_i32 = arith.constant 0 : i32
    %c0_i32_0 = arith.constant 0 : i32
    return %arg0, %c0_i32 : i32, i32
  }
}

</mosaic_0001>

<llo_original>
// kernel: res_block_forward.1
$region0: #{res_block_forward.1}
  #allocation0 [shape = 'u32[]', space=smem, size = 0x4, offset = 0x4, fixed_abs, tag = 'smem constant byte address 0x4 - core index']
  #allocation1 [shape = 'u32[72,128]{1,0:T(1,128)}', space=vmem, size = 0x9000, scoped, tag = 'internal scratch']
  #allocation2 [shape = 'f32[36,128]{1,0:T(8,128)}', space=vmem, size = 0x5000, scoped, tag = 'scratch operand']
  %s0 = inlined_call_operand.vmem [shape: f32[64,128], index: 0, kind: input, shape index: {}]
  %s1 = inlined_call_operand.vmem [shape: bf16[128,128], index: 1, kind: input, shape index: {}]
  %s2 = inlined_call_operand.vmem [shape: f32[1,128], index: 2, kind: input, shape index: {}]
  %s3 = inlined_call_operand.vmem [shape: bf16[384,128], index: 3, kind: input, shape index: {}]
  %s4 = inlined_call_operand.vmem [shape: f32[1,128], index: 4, kind: input, shape index: {}]
  %s5 = inlined_call_operand.vmem [shape: f32[1,128], index: 5, kind: input, shape index: {}]
  %s6 = inlined_call_operand.vmem [shape: bf16[384,128], index: 6, kind: input, shape index: {}]
  %s7 = inlined_call_operand.vmem [shape: f32[1,128], index: 7, kind: input, shape index: {}]
  %s8 = inlined_call_operand.vmem [shape: f32[1,128], index: 8, kind: input, shape index: {}]
  %s9 = inlined_call_operand.vmem [shape: bf16[256,128], index: 9, kind: input, shape index: {}]
  %s10 = inlined_call_operand.vmem [shape: f32[1,128], index: 10, kind: input, shape index: {}]
  %s11 = inlined_call_operand.vmem [shape: f32[1,128], index: 11, kind: input, shape index: {}]
  %s12 = inlined_call_operand.vmem [shape: bf16[384,128], index: 12, kind: input, shape index: {}]
  %s13 = inlined_call_operand.vmem [shape: f32[1,128], index: 13, kind: input, shape index: {}]
  %s14 = inlined_call_operand.vmem [shape: f32[1,128], index: 14, kind: input, shape index: {}]
  %s15 = inlined_call_operand.vmem [shape: bf16[8,32], index: 15, kind: input, shape index: {}]
  %s16 = inlined_call_operand.vmem [shape: bf16[8,32], index: 16, kind: input, shape index: {}]
  %s17 = inlined_call_operand.vmem [shape: bf16[256,128], index: 17, kind: input, shape index: {}]
  %s18 = inlined_call_operand.vmem [shape: f32[64,128], index: 18, kind: output, shape index: {0}]
  %s19 = inlined_call_operand.vmem [shape: f32[16,128], index: 19, kind: output, shape index: {1}]
  %20 = xla_tuple %s18, %s19
  %s21 = sld [smem:[#allocation0]]
  $region113: #{res_block_forward.1} parent=0
    _
  %s23 = ssub.s32 1, %s21
  %s24 = scalar_select 0, %s23, %s21
  loop: start=0, step=1, limit=4
  $region2: #{res_block_forward.1} parent=0 // loop_pre_header
    _
  $region3: #{res_block_forward.1} parent=0 // loop_header
    %s26 = sphi 0, %s30
    %p27 = scmp.ge.s32.totalorder %s26, 4
    %s36 = sphi 0, %s38
    %s39 = sphi 0, %s36
    %s40 = sphi 0, %s39
    %s56 = sphi 0, %s40
    %s60 = sphi 0, %s60
    %s62 = sphi 0, %s60
    %s63 = sphi 0, %s62
    %s77 = sphi 0, %s63
    %s81 = sphi 0, %s81
    %s83 = sphi 0, %s81
    %s84 = sphi 0, %s83
    %s98 = sphi 0, %s84
    %s102 = sphi 0, %s102
    %s104 = sphi 0, %s102
    %s105 = sphi 0, %s104
    %s119 = sphi 0, %s105
    %s123 = sphi 0, %s123
    %s125 = sphi 0, %s123
    %s126 = sphi 0, %s125
    %s140 = sphi 0, %s126
    %s144 = sphi 0, %s144
    %s146 = sphi 0, %s144
    %s147 = sphi 0, %s146
    %s161 = sphi 0, %s147
    %s165 = sphi 0, %s165
    %s167 = sphi 0, %s165
    %s168 = sphi 0, %s167
    %s182 = sphi 0, %s168
    %s186 = sphi 0, %s186
    %s188 = sphi 0, %s186
    %s189 = sphi 0, %s188
    %s203 = sphi 0, %s189
    %s207 = sphi 0, %s207
    %s209 = sphi 0, %s207
    %s210 = sphi 0, %s209
    %s224 = sphi 0, %s210
    %s228 = sphi 0, %s228
    %s230 = sphi 0, %s228
    %s231 = sphi 0, %s230
    %s245 = sphi 0, %s231
    %s249 = sphi 0, %s249
    %s251 = sphi 0, %s249
    %s252 = sphi 0, %s251
    %s266 = sphi 0, %s252
    %s270 = sphi 0, %s270
    %s272 = sphi 0, %s270
    %s273 = sphi 0, %s272
    %s287 = sphi 0, %s273
    %s291 = sphi 0, %s291
    %s293 = sphi 0, %s291
    %s294 = sphi 0, %s293
    %s308 = sphi 0, %s294
    %s312 = sphi 0, %s312
    %s314 = sphi 0, %s312
    %s315 = sphi 0, %s314
    %s329 = sphi 0, %s315
    %s333 = sphi 0, %s333
    %s335 = sphi 0, %s333
    %s336 = sphi 0, %s335
    %s350 = sphi 0, %s336
    %s354 = sphi 0, %s354
    %s356 = sphi 0, %s354
    %s357 = sphi 0, %s356
    %s371 = sphi 0, %s357
    %s375 = sphi 0, %s375
    %s377 = sphi 0, %s375
    %s378 = sphi 0, %s377
    %s392 = sphi 0, %s378
    %s396 = sphi 0, %s396
    %s398 = sphi 0, %s396
    %s399 = sphi 0, %s398
    %s413 = sphi 0, %s399
    %s419 = sphi 0, %s421
    %s422 = sphi 0, %s419
    %s423 = sphi 0, %s422
    %s439 = sphi 0, %s423
    %s445 = sphi 0, %s447
    %s448 = sphi 0, %s445
    %s449 = sphi 0, %s448
    %s465 = sphi 0, %s449
  $region4: #{res_block_forward.1} parent=0 // loop_header_branch
    %29 = sbr.rel (%p27) target = $region8
  $region5: #{res_block_forward.1} parent=0 // loop_body
    %s31 = ssub.s32 %s26, 1
    %s32 = ssub.s32 %s26, 2
    %s33 = sadd.s32 %s26, 1
    %s34 = ssub.s32 %s26, %s33
    %p35 = scmp.eq.s32.totalorder %s34, 0
    %s37 = sadd.s32 %s36, 1
    %s38 = scalar_select %p35, %s36, %s37
    %p41 = pneg %p35
    %p42 = scmp.eq.s32.totalorder %s26, 1
    %p43 = por %p41, %p42
    %p44 = scmp.ne.s32.totalorder %s36, %s39
    %p45 = scmp.eq.s32.totalorder %s26, 0
    %p46 = por %p44, %p45
    %p47 = scmp.ne.s32.totalorder %s36, %s39
    %p48 = scmp.eq.s32.totalorder %s31, 1
    %p49 = por %p47, %p48
    %p50 = scmp.ne.s32.totalorder %s39, %s40
    %p51 = scmp.eq.s32.totalorder %s31, 0
    %p52 = por %p50, %p51
    %p53 = scmp.ne.s32.totalorder %s39, %s40
    %p54 = scmp.eq.s32.totalorder %s32, 1
    %p55 = por %p53, %p54
    %p57 = scmp.ne.s32.totalorder %s40, %s56
    %p58 = scmp.eq.s32.totalorder %s32, 0
    %p59 = por %p57, %p58
    %s61 = sadd.s32 %s60, 1
    %p64 = scmp.eq.s32.totalorder %s26, 1
    %p65 = scmp.ne.s32.totalorder %s60, %s62
    %p66 = scmp.eq.s32.totalorder %s26, 0
    %p67 = por %p65, %p66
    %p68 = scmp.ne.s32.totalorder %s60, %s62
    %p69 = scmp.eq.s32.totalorder %s31, 1
    %p70 = por %p68, %p69
    %p71 = scmp.ne.s32.totalorder %s62, %s63
    %p72 = scmp.eq.s32.totalorder %s31, 0
    %p73 = por %p71, %p72
    %p74 = scmp.ne.s32.totalorder %s62, %s63
    %p75 = scmp.eq.s32.totalorder %s32, 1
    %p76 = por %p74, %p75
    %p78 = scmp.ne.s32.totalorder %s63, %s77
    %p79 = scmp.eq.s32.totalorder %s32, 0
    %p80 = por %p78, %p79
    %s82 = sadd.s32 %s81, 1
    %p85 = scmp.eq.s32.totalorder %s26, 1
    %p86 = scmp.ne.s32.totalorder %s81, %s83
    %p87 = scmp.eq.s32.totalorder %s26, 0
    %p88 = por %p86, %p87
    %p89 = scmp.ne.s32.totalorder %s81, %s83
    %p90 = scmp.eq.s32.totalorder %s31, 1
    %p91 = por %p89, %p90
    %p92 = scmp.ne.s32.totalorder %s83, %s84
    %p93 = scmp.eq.s32.totalorder %s31, 0
    %p94 = por %p92, %p93
    %p95 = scmp.ne.s32.totalorder %s83, %s84
    %p96 = scmp.eq.s32.totalorder %s32, 1
    %p97 = por %p95, %p96
    %p99 = scmp.ne.s32.totalorder %s84, %s98
    %p100 = scmp.eq.s32.totalorder %s32, 0
    %p101 = por %p99, %p100
    %s103 = sadd.s32 %s102, 1
    %p106 = scmp.eq.s32.totalorder %s26, 1
    %p107 = scmp.ne.s32.totalorder %s102, %s104
    %p108 = scmp.eq.s32.totalorder %s26, 0
    %p109 = por %p107, %p108
    %p110 = scmp.ne.s32.totalorder %s102, %s104
    %p111 = scmp.eq.s32.totalorder %s31, 1
    %p112 = por %p110, %p111
    %p113 = scmp.ne.s32.totalorder %s104, %s105
    %p114 = scmp.eq.s32.totalorder %s31, 0
    %p115 = por %p113, %p114
    %p116 = scmp.ne.s32.totalorder %s104, %s105
    %p117 = scmp.eq.s32.totalorder %s32, 1
    %p118 = por %p116, %p117
    %p120 = scmp.ne.s32.totalorder %s105, %s119
    %p121 = scmp.eq.s32.totalorder %s32, 0
    %p122 = por %p120, %p121
    %s124 = sadd.s32 %s123, 1
    %p127 = scmp.eq.s32.totalorder %s26, 1
    %p128 = scmp.ne.s32.totalorder %s123, %s125
    %p129 = scmp.eq.s32.totalorder %s26, 0
    %p130 = por %p128, %p129
    %p131 = scmp.ne.s32.totalorder %s123, %s125
    %p132 = scmp.eq.s32.totalorder %s31, 1
    %p133 = por %p131, %p132
    %p134 = scmp.ne.s32.totalorder %s125, %s126
    %p135 = scmp.eq.s32.totalorder %s31, 0
    %p136 = por %p134, %p135
    %p137 = scmp.ne.s32.totalorder %s125, %s126
    %p138 = scmp.eq.s32.totalorder %s32, 1
    %p139 = por %p137, %p138
    %p141 = scmp.ne.s32.totalorder %s126, %s140
    %p142 = scmp.eq.s32.totalorder %s32, 0
    %p143 = por %p141, %p142
    %s145 = sadd.s32 %s144, 1
    %p148 = scmp.eq.s32.totalorder %s26, 1
    %p149 = scmp.ne.s32.totalorder %s144, %s146
    %p150 = scmp.eq.s32.totalorder %s26, 0
    %p151 = por %p149, %p150
    %p152 = scmp.ne.s32.totalorder %s144, %s146
    %p153 = scmp.eq.s32.totalorder %s31, 1
    %p154 = por %p152, %p153
    %p155 = scmp.ne.s32.totalorder %s146, %s147
    %p156 = scmp.eq.s32.totalorder %s31, 0
    %p157 = por %p155, %p156
    %p158 = scmp.ne.s32.totalorder %s146, %s147
    %p159 = scmp.eq.s32.totalorder %s32, 1
    %p160 = por %p158, %p159
    %p162 = scmp.ne.s32.totalorder %s147, %s161
    %p163 = scmp.eq.s32.totalorder %s32, 0
    %p164 = por %p162, %p163
    %s166 = sadd.s32 %s165, 1
    %p169 = scmp.eq.s32.totalorder %s26, 1
    %p170 = scmp.ne.s32.totalorder %s165, %s167
    %p171 = scmp.eq.s32.totalorder %s26, 0
    %p172 = por %p170, %p171
    %p173 = scmp.ne.s32.totalorder %s165, %s167
    %p174 = scmp.eq.s32.totalorder %s31, 1
    %p175 = por %p173, %p174
    %p176 = scmp.ne.s32.totalorder %s167, %s168
    %p177 = scmp.eq.s32.totalorder %s31, 0
    %p178 = por %p176, %p177
    %p179 = scmp.ne.s32.totalorder %s167, %s168
    %p180 = scmp.eq.s32.totalorder %s32, 1
    %p181 = por %p179, %p180
    %p183 = scmp.ne.s32.totalorder %s168, %s182
    %p184 = scmp.eq.s32.totalorder %s32, 0
    %p185 = por %p183, %p184
    %s187 = sadd.s32 %s186, 1
    %p190 = scmp.eq.s32.totalorder %s26, 1
    %p191 = scmp.ne.s32.totalorder %s186, %s188
    %p192 = scmp.eq.s32.totalorder %s26, 0
    %p193 = por %p191, %p192
    %p194 = scmp.ne.s32.totalorder %s186, %s188
    %p195 = scmp.eq.s32.totalorder %s31, 1
    %p196 = por %p194, %p195
    %p197 = scmp.ne.s32.totalorder %s188, %s189
    %p198 = scmp.eq.s32.totalorder %s31, 0
    %p199 = por %p197, %p198
    %p200 = scmp.ne.s32.totalorder %s188, %s189
    %p201 = scmp.eq.s32.totalorder %s32, 1
    %p202 = por %p200, %p201
    %p204 = scmp.ne.s32.totalorder %s189, %s203
    %p205 = scmp.eq.s32.totalorder %s32, 0
    %p206 = por %p204, %p205
    %s208 = sadd.s32 %s207, 1
    %p211 = scmp.eq.s32.totalorder %s26, 1
    %p212 = scmp.ne.s32.totalorder %s207, %s209
    %p213 = scmp.eq.s32.totalorder %s26, 0
    %p214 = por %p212, %p213
    %p215 = scmp.ne.s32.totalorder %s207, %s209
    %p216 = scmp.eq.s32.totalorder %s31, 1
    %p217 = por %p215, %p216
    %p218 = scmp.ne.s32.totalorder %s209, %s210
    %p219 = scmp.eq.s32.totalorder %s31, 0
    %p220 = por %p218, %p219
    %p221 = scmp.ne.s32.totalorder %s209, %s210
    %p222 = scmp.eq.s32.totalorder %s32, 1
    %p223 = por %p221, %p222
    %p225 = scmp.ne.s32.totalorder %s210, %s224
    %p226 = scmp.eq.s32.totalorder %s32, 0
    %p227 = por %p225, %p226
    %s229 = sadd.s32 %s228, 1
    %p232 = scmp.eq.s32.totalorder %s26, 1
    %p233 = scmp.ne.s32.totalorder %s228, %s230
    %p234 = scmp.eq.s32.totalorder %s26, 0
    %p235 = por %p233, %p234
    %p236 = scmp.ne.s32.totalorder %s228, %s230
    %p237 = scmp.eq.s32.totalorder %s31, 1
    %p238 = por %p236, %p237
    %p239 = scmp.ne.s32.totalorder %s230, %s231
    %p240 = scmp.eq.s32.totalorder %s31, 0
    %p241 = por %p239, %p240
    %p242 = scmp.ne.s32.totalorder %s230, %s231
    %p243 = scmp.eq.s32.totalorder %s32, 1
    %p244 = por %p242, %p243
    %p246 = scmp.ne.s32.totalorder %s231, %s245
    %p247 = scmp.eq.s32.totalorder %s32, 0
    %p248 = por %p246, %p247
    %s250 = sadd.s32 %s249, 1
    %p253 = scmp.eq.s32.totalorder %s26, 1
    %p254 = scmp.ne.s32.totalorder %s249, %s251
    %p255 = scmp.eq.s32.totalorder %s26, 0
    %p256 = por %p254, %p255
    %p257 = scmp.ne.s32.totalorder %s249, %s251
    %p258 = scmp.eq.s32.totalorder %s31, 1
    %p259 = por %p257, %p258
    %p260 = scmp.ne.s32.totalorder %s251, %s252
    %p261 = scmp.eq.s32.totalorder %s31, 0
    %p262 = por %p260, %p261
    %p263 = scmp.ne.s32.totalorder %s251, %s252
    %p264 = scmp.eq.s32.totalorder %s32, 1
    %p265 = por %p263, %p264
    %p267 = scmp.ne.s32.totalorder %s252, %s266
    %p268 = scmp.eq.s32.totalorder %s32, 0
    %p269 = por %p267, %p268
    %s271 = sadd.s32 %s270, 1
    %p274 = scmp.eq.s32.totalorder %s26, 1
    %p275 = scmp.ne.s32.totalorder %s270, %s272
    %p276 = scmp.eq.s32.totalorder %s26, 0
    %p277 = por %p275, %p276
    %p278 = scmp.ne.s32.totalorder %s270, %s272
    %p279 = scmp.eq.s32.totalorder %s31, 1
    %p280 = por %p278, %p279
    %p281 = scmp.ne.s32.totalorder %s272, %s273
    %p282 = scmp.eq.s32.totalorder %s31, 0
    %p283 = por %p281, %p282
    %p284 = scmp.ne.s32.totalorder %s272, %s273
    %p285 = scmp.eq.s32.totalorder %s32, 1
    %p286 = por %p284, %p285
    %p288 = scmp.ne.s32.totalorder %s273, %s287
    %p289 = scmp.eq.s32.totalorder %s32, 0
    %p290 = por %p288, %p289
    %s292 = sadd.s32 %s291, 1
    %p295 = scmp.eq.s32.totalorder %s26, 1
    %p296 = scmp.ne.s32.totalorder %s291, %s293
    %p297 = scmp.eq.s32.totalorder %s26, 0
    %p298 = por %p296, %p297
    %p299 = scmp.ne.s32.totalorder %s291, %s293
    %p300 = scmp.eq.s32.totalorder %s31, 1
    %p301 = por %p299, %p300
    %p302 = scmp.ne.s32.totalorder %s293, %s294
    %p303 = scmp.eq.s32.totalorder %s31, 0
    %p304 = por %p302, %p303
    %p305 = scmp.ne.s32.totalorder %s293, %s294
    %p306 = scmp.eq.s32.totalorder %s32, 1
    %p307 = por %p305, %p306
    %p309 = scmp.ne.s32.totalorder %s294, %s308
    %p310 = scmp.eq.s32.totalorder %s32, 0
    %p311 = por %p309, %p310
    %s313 = sadd.s32 %s312, 1
    %p316 = scmp.eq.s32.totalorder %s26, 1
    %p317 = scmp.ne.s32.totalorder %s312, %s314
    %p318 = scmp.eq.s32.totalorder %s26, 0
    %p319 = por %p317, %p318
    %p320 = scmp.ne.s32.totalorder %s312, %s314
    %p321 = scmp.eq.s32.totalorder %s31, 1
    %p322 = por %p320, %p321
    %p323 = scmp.ne.s32.totalorder %s314, %s315
    %p324 = scmp.eq.s32.totalorder %s31, 0
    %p325 = por %p323, %p324
    %p326 = scmp.ne.s32.totalorder %s314, %s315
    %p327 = scmp.eq.s32.totalorder %s32, 1
    %p328 = por %p326, %p327
    %p330 = scmp.ne.s32.totalorder %s315, %s329
    %p331 = scmp.eq.s32.totalorder %s32, 0
    %p332 = por %p330, %p331
    %s334 = sadd.s32 %s333, 1
    %p337 = scmp.eq.s32.totalorder %s26, 1
    %p338 = scmp.ne.s32.totalorder %s333, %s335
    %p339 = scmp.eq.s32.totalorder %s26, 0
    %p340 = por %p338, %p339
    %p341 = scmp.ne.s32.totalorder %s333, %s335
    %p342 = scmp.eq.s32.totalorder %s31, 1
    %p343 = por %p341, %p342
    %p344 = scmp.ne.s32.totalorder %s335, %s336
    %p345 = scmp.eq.s32.totalorder %s31, 0
    %p346 = por %p344, %p345
    %p347 = scmp.ne.s32.totalorder %s335, %s336
    %p348 = scmp.eq.s32.totalorder %s32, 1
    %p349 = por %p347, %p348
    %p351 = scmp.ne.s32.totalorder %s336, %s350
    %p352 = scmp.eq.s32.totalorder %s32, 0
    %p353 = por %p351, %p352
    %s355 = sadd.s32 %s354, 1
    %p358 = scmp.eq.s32.totalorder %s26, 1
    %p359 = scmp.ne.s32.totalorder %s354, %s356
    %p360 = scmp.eq.s32.totalorder %s26, 0
    %p361 = por %p359, %p360
    %p362 = scmp.ne.s32.totalorder %s354, %s356
    %p363 = scmp.eq.s32.totalorder %s31, 1
    %p364 = por %p362, %p363
    %p365 = scmp.ne.s32.totalorder %s356, %s357
    %p366 = scmp.eq.s32.totalorder %s31, 0
    %p367 = por %p365, %p366
    %p368 = scmp.ne.s32.totalorder %s356, %s357
    %p369 = scmp.eq.s32.totalorder %s32, 1
    %p370 = por %p368, %p369
    %p372 = scmp.ne.s32.totalorder %s357, %s371
    %p373 = scmp.eq.s32.totalorder %s32, 0
    %p374 = por %p372, %p373
    %s376 = sadd.s32 %s375, 1
    %p379 = scmp.eq.s32.totalorder %s26, 1
    %p380 = scmp.ne.s32.totalorder %s375, %s377
    %p381 = scmp.eq.s32.totalorder %s26, 0
    %p382 = por %p380, %p381
    %p383 = scmp.ne.s32.totalorder %s375, %s377
    %p384 = scmp.eq.s32.totalorder %s31, 1
    %p385 = por %p383, %p384
    %p386 = scmp.ne.s32.totalorder %s377, %s378
    %p387 = scmp.eq.s32.totalorder %s31, 0
    %p388 = por %p386, %p387
    %p389 = scmp.ne.s32.totalorder %s377, %s378
    %p390 = scmp.eq.s32.totalorder %s32, 1
    %p391 = por %p389, %p390
    %p393 = scmp.ne.s32.totalorder %s378, %s392
    %p394 = scmp.eq.s32.totalorder %s32, 0
    %p395 = por %p393, %p394
    %s397 = sadd.s32 %s396, 1
    %p400 = scmp.eq.s32.totalorder %s26, 1
    %p401 = scmp.ne.s32.totalorder %s396, %s398
    %p402 = scmp.eq.s32.totalorder %s26, 0
    %p403 = por %p401, %p402
    %p404 = scmp.ne.s32.totalorder %s396, %s398
    %p405 = scmp.eq.s32.totalorder %s31, 1
    %p406 = por %p404, %p405
    %p407 = scmp.ne.s32.totalorder %s398, %s399
    %p408 = scmp.eq.s32.totalorder %s31, 0
    %p409 = por %p407, %p408
    %p410 = scmp.ne.s32.totalorder %s398, %s399
    %p411 = scmp.eq.s32.totalorder %s32, 1
    %p412 = por %p410, %p411
    %p414 = scmp.ne.s32.totalorder %s399, %s413
    %p415 = scmp.eq.s32.totalorder %s32, 0
    %p416 = por %p414, %p415
    %s417 = ssub.s32 %s26, %s33
    %p418 = scmp.eq.s32.totalorder %s417, 0
    %s420 = sadd.s32 %s419, 1
    %s421 = scalar_select %p418, %s419, %s420
    %p424 = pneg %p418
    %p425 = scmp.eq.s32.totalorder %s26, 1
    %p426 = por %p424, %p425
    %p427 = scmp.ne.s32.totalorder %s419, %s422
    %p428 = scmp.eq.s32.totalorder %s26, 0
    %p429 = por %p427, %p428
    %p430 = scmp.ne.s32.totalorder %s419, %s422
    %p431 = scmp.eq.s32.totalorder %s31, 1
    %p432 = por %p430, %p431
    %p433 = scmp.ne.s32.totalorder %s422, %s423
    %p434 = scmp.eq.s32.totalorder %s31, 0
    %p435 = por %p433, %p434
    %p436 = scmp.ne.s32.totalorder %s422, %s423
    %p437 = scmp.eq.s32.totalorder %s32, 1
    %p438 = por %p436, %p437
    %p440 = scmp.ne.s32.totalorder %s423, %s439
    %p441 = scmp.eq.s32.totalorder %s32, 0
    %p442 = por %p440, %p441
    %s443 = ssub.s32 %s26, %s33
    %p444 = scmp.eq.s32.totalorder %s443, 0
    %s446 = sadd.s32 %s445, 1
    %s447 = scalar_select %p444, %s445, %s446
    %p450 = pneg %p444
    %p451 = scmp.eq.s32.totalorder %s26, 1
    %p452 = por %p450, %p451
    %p453 = scmp.ne.s32.totalorder %s445, %s448
    %p454 = scmp.eq.s32.totalorder %s26, 0
    %p455 = por %p453, %p454
    %p456 = scmp.ne.s32.totalorder %s445, %s448
    %p457 = scmp.eq.s32.totalorder %s31, 1
    %p458 = por %p456, %p457
    %p459 = scmp.ne.s32.totalorder %s448, %s449
    %p460 = scmp.eq.s32.totalorder %s31, 0
    %p461 = por %p459, %p460
    %p462 = scmp.ne.s32.totalorder %s448, %s449
    %p463 = scmp.eq.s32.totalorder %s32, 1
    %p464 = por %p462, %p463
    %p466 = scmp.ne.s32.totalorder %s449, %s465
    %p467 = scmp.eq.s32.totalorder %s32, 0
    %p468 = por %p466, %p467
    %p469 = scmp.le.s32.totalorder 1, %s26
    %p470 = scmp.lt.s32.totalorder %s26, 3
    %p471 = pnand %p469, %p470
    %p472 = pneg %p471
    // Predicated region
    $region9: #{res_block_forward.1} parent=5 // pred_check
      _
    $region10: #{res_block_forward.1} parent=5 // pred_check_branch
      %474 = sbr.rel (%p471) target = $region12
    $region11: #{res_block_forward.1} parent=5 // pred_region
      %s475 = ssub.s32 %s26, 1
      // Predicated region
      $region13: #{res_block_forward.1} parent=11 // pred_check
        %p476 = pneg %p73
      $region14: #{res_block_forward.1} parent=11 // pred_check_branch
        %478 = sbr.rel (%p476) target = $region16
      $region15: #{res_block_forward.1} parent=11 // pred_region
        _
      $region16: #{res_block_forward.1} parent=11 // pred_fallthru
        _
      // Predicated region
      $region17: #{res_block_forward.1} parent=11 // pred_check
        %p479 = pneg %p94
      $region18: #{res_block_forward.1} parent=11 // pred_check_branch
        %481 = sbr.rel (%p479) target = $region20
      $region19: #{res_block_forward.1} parent=11 // pred_region
        _
      $region20: #{res_block_forward.1} parent=11 // pred_fallthru
        _
      // Predicated region
      $region21: #{res_block_forward.1} parent=11 // pred_check
        %p482 = pneg %p115
      $region22: #{res_block_forward.1} parent=11 // pred_check_branch
        %484 = sbr.rel (%p482) target = $region24
      $region23: #{res_block_forward.1} parent=11 // pred_region
        _
      $region24: #{res_block_forward.1} parent=11 // pred_fallthru
        _
      // Predicated region
      $region25: #{res_block_forward.1} parent=11 // pred_check
        %p485 = pneg %p136
      $region26: #{res_block_forward.1} parent=11 // pred_check_branch
        %487 = sbr.rel (%p485) target = $region28
      $region27: #{res_block_forward.1} parent=11 // pred_region
        _
      $region28: #{res_block_forward.1} parent=11 // pred_fallthru
        _
      // Predicated region
      $region29: #{res_block_forward.1} parent=11 // pred_check
        %p488 = pneg %p157
      $region30: #{res_block_forward.1} parent=11 // pred_check_branch
        %490 = sbr.rel (%p488) target = $region32
      $region31: #{res_block_forward.1} parent=11 // pred_region
        _
      $region32: #{res_block_forward.1} parent=11 // pred_fallthru
        _
      // Predicated region
      $region33: #{res_block_forward.1} parent=11 // pred_check
        %p491 = pneg %p178
      $region34: #{res_block_forward.1} parent=11 // pred_check_branch
        %493 = sbr.rel (%p491) target = $region36
      $region35: #{res_block_forward.1} parent=11 // pred_region
        _
      $region36: #{res_block_forward.1} parent=11 // pred_fallthru
        _
      // Predicated region
      $region37: #{res_block_forward.1} parent=11 // pred_check
        %p494 = pneg %p199
      $region38: #{res_block_forward.1} parent=11 // pred_check_branch
        %496 = sbr.rel (%p494) target = $region40
      $region39: #{res_block_forward.1} parent=11 // pred_region
        _
      $region40: #{res_block_forward.1} parent=11 // pred_fallthru
        _
      // Predicated region
      $region41: #{res_block_forward.1} parent=11 // pred_check
        %p497 = pneg %p220
      $region42: #{res_block_forward.1} parent=11 // pred_check_branch
        %499 = sbr.rel (%p497) target = $region44
      $region43: #{res_block_forward.1} parent=11 // pred_region
        _
      $region44: #{res_block_forward.1} parent=11 // pred_fallthru
        _
      // Predicated region
      $region45: #{res_block_forward.1} parent=11 // pred_check
        %p500 = pneg %p241
      $region46: #{res_block_forward.1} parent=11 // pred_check_branch
        %502 = sbr.rel (%p500) target = $region48
      $region47: #{res_block_forward.1} parent=11 // pred_region
        _
      $region48: #{res_block_forward.1} parent=11 // pred_fallthru
        _
      // Predicated region
      $region49: #{res_block_forward.1} parent=11 // pred_check
        %p503 = pneg %p262
      $region50: #{res_block_forward.1} parent=11 // pred_check_branch
        %505 = sbr.rel (%p503) target = $region52
      $region51: #{res_block_forward.1} parent=11 // pred_region
        _
      $region52: #{res_block_forward.1} parent=11 // pred_fallthru
        _
      // Predicated region
      $region53: #{res_block_forward.1} parent=11 // pred_check
        %p506 = pneg %p283
      $region54: #{res_block_forward.1} parent=11 // pred_check_branch
        %508 = sbr.rel (%p506) target = $region56
      $region55: #{res_block_forward.1} parent=11 // pred_region
        _
      $region56: #{res_block_forward.1} parent=11 // pred_fallthru
        _
      // Predicated region
      $region57: #{res_block_forward.1} parent=11 // pred_check
        %p509 = pneg %p304
      $region58: #{res_block_forward.1} parent=11 // pred_check_branch
        %511 = sbr.rel (%p509) target = $region60
      $region59: #{res_block_forward.1} parent=11 // pred_region
        _
      $region60: #{res_block_forward.1} parent=11 // pred_fallthru
        _
      // Predicated region
      $region61: #{res_block_forward.1} parent=11 // pred_check
        %p512 = pneg %p325
      $region62: #{res_block_forward.1} parent=11 // pred_check_branch
        %514 = sbr.rel (%p512) target = $region64
      $region63: #{res_block_forward.1} parent=11 // pred_region
        _
      $region64: #{res_block_forward.1} parent=11 // pred_fallthru
        _
      // Predicated region
      $region65: #{res_block_forward.1} parent=11 // pred_check
        %p515 = pneg %p346
      $region66: #{res_block_forward.1} parent=11 // pred_check_branch
        %517 = sbr.rel (%p515) target = $region68
      $region67: #{res_block_forward.1} parent=11 // pred_region
        _
      $region68: #{res_block_forward.1} parent=11 // pred_fallthru
        _
      // Predicated region
      $region69: #{res_block_forward.1} parent=11 // pred_check
        %p518 = pneg %p367
      $region70: #{res_block_forward.1} parent=11 // pred_check_branch
        %520 = sbr.rel (%p518) target = $region72
      $region71: #{res_block_forward.1} parent=11 // pred_region
        _
      $region72: #{res_block_forward.1} parent=11 // pred_fallthru
        _
      // Predicated region
      $region73: #{res_block_forward.1} parent=11 // pred_check
        %p521 = pneg %p388
      $region74: #{res_block_forward.1} parent=11 // pred_check_branch
        %523 = sbr.rel (%p521) target = $region76
      $region75: #{res_block_forward.1} parent=11 // pred_region
        _
      $region76: #{res_block_forward.1} parent=11 // pred_fallthru
        _
      // Predicated region
      $region77: #{res_block_forward.1} parent=11 // pred_check
        %p524 = pneg %p409
      $region78: #{res_block_forward.1} parent=11 // pred_check_branch
        %526 = sbr.rel (%p524) target = $region80
      $region79: #{res_block_forward.1} parent=11 // pred_region
        _
      $region80: #{res_block_forward.1} parent=11 // pred_fallthru
        _
    $region12: #{res_block_forward.1} parent=5 // pred_fallthru
      _
    %p527 = scmp.lt.s32.totalorder %s26, 2
    // Predicated region
    $region81: #{res_block_forward.1} parent=5 // pred_check
      %p528 = pneg %p527
    $region82: #{res_block_forward.1} parent=5 // pred_check_branch
      %530 = sbr.rel (%p528) target = $region84
    $region83: #{res_block_forward.1} parent=5 // pred_region
      // Predicated region
      $region85: #{res_block_forward.1} parent=83 // pred_check
        %p531 = pneg %p46
      $region86: #{res_block_forward.1} parent=83 // pred_check_branch
        %533 = sbr.rel (%p531) target = $region88
      $region87: #{res_block_forward.1} parent=83 // pred_region
        %s534 = smul.u32 4, %s26
        %p535 = scmp.lt.s32.totalorder %s534, 7
        %s536 = scalar_select %p535, %s534, 7
        %s537 = smul.addr %s536, 8
        %s538 = scalar_lea.vmem %s0, %s537
        %s539 = smul.u32 4, %s26
      $region88: #{res_block_forward.1} parent=83 // pred_fallthru
        _
    $region84: #{res_block_forward.1} parent=5 // pred_fallthru
      _
    %p540 = scmp.le.s32.totalorder 1, %s26
    %p541 = scmp.lt.s32.totalorder %s26, 3
    %p542 = pnand %p540, %p541
    %p543 = pneg %p542
    // Predicated region
    $region89: #{res_block_forward.1} parent=5 // pred_check
      _
    $region90: #{res_block_forward.1} parent=5 // pred_check_branch
      %545 = sbr.rel (%p542) target = $region92
    $region91: #{res_block_forward.1} parent=5 // pred_region
      %s546 = ssub.s32 %s26, 1
      %s547 = smul.u32 4, %s31
      %p548 = scmp.lt.s32.totalorder %s547, 7
      %s549 = scalar_select %p548, %s547, 7
      %s550 = smul.addr %s549, 8
      %s551 = scalar_lea.vmem %s0, %s550
      %p552 = pneg %p52
      %p553 = pneg %p49
      %p554 = pneg %p73
      %p555 = pneg %p70
      %p556 = pneg %p94
      %p557 = pneg %p91
      %p558 = pneg %p115
      %p559 = pneg %p112
      %p560 = pneg %p136
      %p561 = pneg %p133
      %p562 = pneg %p157
      %p563 = pneg %p154
      %p564 = pneg %p178
      %p565 = pneg %p175
      %p566 = pneg %p199
      %p567 = pneg %p196
      %p568 = pneg %p220
      %p569 = pneg %p217
      %p570 = pneg %p241
      %p571 = pneg %p238
      %p572 = pneg %p262
      %p573 = pneg %p259
      %p574 = pneg %p283
      %p575 = pneg %p280
      %p576 = pneg %p304
      %p577 = pneg %p301
      %p578 = pneg %p325
      %p579 = pneg %p322
      %p580 = pneg %p346
      %p581 = pneg %p343
      %p582 = pneg %p367
      %p583 = pneg %p364
      %p584 = pneg %p388
      %p585 = pneg %p385
      %p586 = pneg %p409
      %p587 = pneg %p406
      %p588 = pneg %p435
      %p589 = pneg %p432
      %s590 = smul.u32 4, %s31
      %p591 = scmp.lt.s32.totalorder %s590, 7
      %s592 = scalar_select %p591, %s590, 7
      %s593 = smul.addr %s592, 8
      %s594 = scalar_lea.vmem %s18, %s593
      %p595 = pneg %p461
      %p596 = pneg %p458
      %p597 = scmp.lt.s32.totalorder %s31, 1
      %s598 = scalar_select %p597, %s31, 1
      %s599 = smul.addr %s598, 8
      %s600 = scalar_lea.vmem %s19, %s599
      %s601 = smul.u32 4, %s31
      %p602 = scmp.lt.s32.totalorder %s601, 7
      %s603 = scalar_select %p602, %s601, 7
      %s604 = smul.addr %s603, 8
      %s605 = scalar_lea.vmem %s0, %s604
      %s606 = smul.u32 4, %s31
      %s607 = smul.u32 4, %s31
      %p608 = scmp.lt.s32.totalorder %s607, 7
      %s609 = scalar_select %p608, %s607, 7
      %s610 = smul.addr %s609, 8
      %s611 = scalar_lea.vmem %s18, %s610
      %s612 = smul.u32 4, %s31
      %p613 = scmp.lt.s32.totalorder %s31, 1
      %s614 = scalar_select %p613, %s31, 1
      %s615 = smul.addr %s614, 8
      %s616 = scalar_lea.vmem %s19, %s615
      %v618 = vlaneseq
      %v619 = vshrl.u32 %v618, 7
      %v620 = vadd.s32 %v619, 8
      %v621 = vadd.s32 %v619, 16
      %v622 = vadd.s32 %v619, 24
      %vm623 = vcmp.lt.s32.totalorder %v619, 0
      %v624 = vsub.s32 0, %v619
      %v625 = vsel %vm623, %v624, %v619
      %v626 = vshrl.u32 %v625, 4
      %v627 = vand.u32 %v625, 15
      %v628 = vsub.s32 0, %v627
      %v629 = vsel %vm623, %v628, %v627
      %vm630 = vcmp.lt.s32.totalorder %v620, 0
      %v631 = vsub.s32 0, %v620
      %v632 = vsel %vm630, %v631, %v620
      %v633 = vshrl.u32 %v632, 4
      %v634 = vand.u32 %v632, 15
      %v635 = vsub.s32 0, %v634
      %v636 = vsel %vm630, %v635, %v634
      %vm637 = vcmp.lt.s32.totalorder %v621, 0
      %v638 = vsub.s32 0, %v621
      %v639 = vsel %vm637, %v638, %v621
      %v640 = vshrl.u32 %v639, 4
      %v641 = vand.u32 %v639, 15
      %v642 = vsub.s32 0, %v641
      %v643 = vsel %vm637, %v642, %v641
      %vm644 = vcmp.lt.s32.totalorder %v622, 0
      %v645 = vsub.s32 0, %v622
      %v646 = vsel %vm644, %v645, %v622
      %v647 = vshrl.u32 %v646, 4
      %v648 = vand.u32 %v646, 15
      %v649 = vsub.s32 0, %v648
      %v650 = vsel %vm644, %v649, %v648
      %vm651 = vcmp.ne.s32.totalorder %v629, 0
      %vm652 = vcmp.ne.s32.totalorder %v636, 0
      %vm653 = vcmp.ne.s32.totalorder %v643, 0
      %vm654 = vcmp.ne.s32.totalorder %v650, 0
      %vm655 = vcmp.lt.s32.totalorder %v629, 0
      %vm656 = vcmp.lt.s32.totalorder %v636, 0
      %vm657 = vcmp.lt.s32.totalorder %v643, 0
      %vm658 = vcmp.lt.s32.totalorder %v650, 0
      %vm659 = vmand %vm655, %vm651
      %vm660 = vmand %vm656, %vm652
      %vm661 = vmand %vm657, %vm653
      %vm662 = vmand %vm658, %vm654
      %v663 = vadd.s32 %v629, 16
      %v664 = vadd.s32 %v636, 16
      %v665 = vadd.s32 %v643, 16
      %v666 = vadd.s32 %v650, 16
      %v667 = vsel %vm659, %v663, %v629
      %v668 = vsel %vm660, %v664, %v636
      %v669 = vsel %vm661, %v665, %v643
      %v670 = vsel %vm662, %v666, %v650
      %v671 = vld [vmem:[%s605] sm:$0xff]
      %v672 = vld [vmem:[%s605 + $0x8] sm:$0xff]
      %v673 = vld [vmem:[%s605 + $0x10] sm:$0xff]
      %v674 = vld [vmem:[%s605 + $0x18] sm:$0xff]
      %v675 = vpack.c.bf16 %v672, %v671
      %v676 = vpack.c.bf16 %v674, %v673
      %v677 = vld [vmem:[%s1] sm:$0xf]
      %v678 = vld [vmem:[%s1 + $0x4] sm:$0xf]
      %v679 = vld [vmem:[%s1 + $0x8] sm:$0xf]
      %v680 = vld [vmem:[%s1 + $0xc] sm:$0xf]
      %v681 = vld [vmem:[%s1 + $0x10] sm:$0xf]
      %v682 = vld [vmem:[%s1 + $0x14] sm:$0xf]
      %v683 = vld [vmem:[%s1 + $0x18] sm:$0xf]
      %v684 = vld [vmem:[%s1 + $0x1c] sm:$0xf]
      %v685 = vld [vmem:[%s1 + $0x20] sm:$0xf]
      %v686 = vld [vmem:[%s1 + $0x24] sm:$0xf]
      %v687 = vld [vmem:[%s1 + $0x28] sm:$0xf]
      %v688 = vld [vmem:[%s1 + $0x2c] sm:$0xf]
      %v689 = vld [vmem:[%s1 + $0x30] sm:$0xf]
      %v690 = vld [vmem:[%s1 + $0x34] sm:$0xf]
      %v691 = vld [vmem:[%s1 + $0x38] sm:$0xf]
      %v692 = vld [vmem:[%s1 + $0x3c] sm:$0xf]
      %v693 = vld [vmem:[%s2] sm:$0x1]
      %v695 = vperm.slane %v693, 0
      %v713 = vunpack.c.l.b16 %v677
      %v714 = vunpack.c.l.b16 %v678
      %v715 = vunpack.c.l.b16 %v679
      %v716 = vunpack.c.l.b16 %v680
      %v717 = vunpack.c.l.b16 %v681
      %v718 = vunpack.c.l.b16 %v682
      %v719 = vunpack.c.l.b16 %v683
      %v720 = vunpack.c.l.b16 %v684
      %v721 = vunpack.c.l.b16 %v685
      %v722 = vunpack.c.l.b16 %v686
      %v723 = vunpack.c.l.b16 %v687
      %v724 = vunpack.c.l.b16 %v688
      %v725 = vunpack.c.l.b16 %v689
      %v726 = vunpack.c.l.b16 %v690
      %v727 = vunpack.c.l.b16 %v691
      %v728 = vunpack.c.l.b16 %v692
      %v729 = vpack.c.b16 %v714, %v713
      %v730 = vpack.c.b16 %v716, %v715
      %v731 = vpack.c.b16 %v718, %v717
      %v732 = vpack.c.b16 %v720, %v719
      %v733 = vpack.c.b16 %v722, %v721
      %v734 = vpack.c.b16 %v724, %v723
      %v735 = vpack.c.b16 %v726, %v725
      %v736 = vpack.c.b16 %v728, %v727
      %745 = vmatpush.bf16.msra.mxu0 %v736
      %746 = vmatpush.bf16.msra.mxu0 %v735
      %747 = vmatpush.bf16.msra.mxu0 %v734
      %748 = vmatpush.bf16.msra.mxu0 %v733
      %749 = vmatpush.bf16.msra.mxu0 %v732
      %750 = vmatpush.bf16.msra.mxu0 %v731
      %751 = vmatpush.bf16.msra.mxu0 %v730
      %752 = vmatpush.bf16.msra.mxu0 %v729
      %753 = vmatmul.bf16.gmra.mxu0 %v675
      %v754 = vpop.f32.mrf.mxu0
      %v755 = vadd.f32 %v695, %v754
      %v756 = vpop.f32.mrf.mxu0
      %v757 = vadd.f32 %v695, %v756
      %758 = vmatmul.bf16.gmra.mxu0 %v676
      %v759 = vpop.f32.mrf.mxu0
      %v760 = vadd.f32 %v695, %v759
      %v761 = vpop.f32.mrf.mxu0
      %v762 = vadd.f32 %v695, %v761
      %763 = vdwg.mxu0
      %v764 = vmul.f32 %v755, 0.01
      %v765 = vmul.f32 %v757, 0.01
      %v766 = vmul.f32 %v760, 0.01
      %v767 = vmul.f32 %v762, 0.01
      %v768 = vmax.f32 %v755, %v764
      %v769 = vmax.f32 %v757, %v765
      %v770 = vmax.f32 %v760, %v766
      %v771 = vmax.f32 %v762, %v767
      %772 = vst [vmem:[#allocation2 + $0x2] sm:$0xff] %v671
      %773 = vst [vmem:[#allocation2 + $0xa] sm:$0xff] %v672
      %774 = vst [vmem:[#allocation2 + $0x12] sm:$0xff] %v673
      %775 = vst [vmem:[#allocation2 + $0x1a] sm:$0xff] %v674
      %v776 = vld [vmem:[#allocation2 + $0x1] sm:$0xff]
      %v777 = vld [vmem:[#allocation2 + $0x9] sm:$0xff]
      %v778 = vld [vmem:[#allocation2 + $0x11] sm:$0xff]
      %v779 = vld [vmem:[#allocation2 + $0x19] sm:$0xff]
      %v780 = vadd.s32 %v667, 4294967295
      %v781 = vadd.s32 %v668, 4294967295
      %v782 = vadd.s32 %v669, 4294967295
      %v783 = vadd.s32 %v670, 4294967295
      %vm784 = vcmp.ge.s32.totalorder %v780, 0
      %vm785 = vcmp.ge.s32.totalorder %v781, 0
      %vm786 = vcmp.ge.s32.totalorder %v782, 0
      %vm787 = vcmp.ge.s32.totalorder %v783, 0
      %vm788 = vcmp.lt.s32.totalorder %v780, 16
      %vm789 = vcmp.lt.s32.totalorder %v781, 16
      %vm790 = vcmp.lt.s32.totalorder %v782, 16
      %vm791 = vcmp.lt.s32.totalorder %v783, 16
      %vm792 = vmand %vm784, %vm788
      %vm793 = vmand %vm785, %vm789
      %vm794 = vmand %vm786, %vm790
      %vm795 = vmand %vm787, %vm791
      %v796 = vsel %vm792, 1, 0
      %v797 = vsel %vm793, 1, 0
      %v798 = vsel %vm794, 1, 0
      %v799 = vsel %vm795, 1, 0
      %vm800 = vcmp.eq.s32.totalorder %v796, 1
      %vm801 = vcmp.eq.s32.totalorder %v797, 1
      %vm802 = vcmp.eq.s32.totalorder %v798, 1
      %vm803 = vcmp.eq.s32.totalorder %v799, 1
      %v804 = vsel %vm800, %v776, 0.0
      %v805 = vsel %vm801, %v777, 0.0
      %v806 = vsel %vm802, %v778, 0.0
      %v807 = vsel %vm803, %v779, 0.0
      %v808 = vld [vmem:[#allocation2 + $0x3] sm:$0xff]
      %v809 = vld [vmem:[#allocation2 + $0xb] sm:$0xff]
      %v810 = vld [vmem:[#allocation2 + $0x13] sm:$0xff]
      %v811 = vld [vmem:[#allocation2 + $0x1b] sm:$0xff]
      %v812 = vadd.s32 %v667, 1
      %v813 = vadd.s32 %v668, 1
      %v814 = vadd.s32 %v669, 1
      %v815 = vadd.s32 %v670, 1
      %vm816 = vcmp.ge.s32.totalorder %v812, 0
      %vm817 = vcmp.ge.s32.totalorder %v813, 0
      %vm818 = vcmp.ge.s32.totalorder %v814, 0
      %vm819 = vcmp.ge.s32.totalorder %v815, 0
      %vm820 = vcmp.lt.s32.totalorder %v812, 16
      %vm821 = vcmp.lt.s32.totalorder %v813, 16
      %vm822 = vcmp.lt.s32.totalorder %v814, 16
      %vm823 = vcmp.lt.s32.totalorder %v815, 16
      %vm824 = vmand %vm816, %vm820
      %vm825 = vmand %vm817, %vm821
      %vm826 = vmand %vm818, %vm822
      %vm827 = vmand %vm819, %vm823
      %v828 = vsel %vm824, 1, 0
      %v829 = vsel %vm825, 1, 0
      %v830 = vsel %vm826, 1, 0
      %v831 = vsel %vm827, 1, 0
      %vm832 = vcmp.eq.s32.totalorder %v828, 1
      %vm833 = vcmp.eq.s32.totalorder %v829, 1
      %vm834 = vcmp.eq.s32.totalorder %v830, 1
      %vm835 = vcmp.eq.s32.totalorder %v831, 1
      %v836 = vsel %vm832, %v808, 0.0
      %v837 = vsel %vm833, %v809, 0.0
      %v838 = vsel %vm834, %v810, 0.0
      %v839 = vsel %vm835, %v811, 0.0
      %v840 = vpack.c.bf16 %v805, %v804
      %v841 = vpack.c.bf16 %v837, %v836
      %v842 = vpack.c.bf16 %v807, %v806
      %v843 = vpack.c.bf16 %v839, %v838
      %v844 = vld [vmem:[%s3] sm:$0xf]
      %v845 = vld [vmem:[%s3 + $0x4] sm:$0xf]
      %v846 = vld [vmem:[%s3 + $0x8] sm:$0xf]
      %v847 = vld [vmem:[%s3 + $0xc] sm:$0xf]
      %v848 = vld [vmem:[%s3 + $0x10] sm:$0xf]
      %v849 = vld [vmem:[%s3 + $0x14] sm:$0xf]
      %v850 = vld [vmem:[%s3 + $0x18] sm:$0xf]
      %v851 = vld [vmem:[%s3 + $0x1c] sm:$0xf]
      %v852 = vld [vmem:[%s3 + $0x20] sm:$0xf]
      %v853 = vld [vmem:[%s3 + $0x24] sm:$0xf]
      %v854 = vld [vmem:[%s3 + $0x28] sm:$0xf]
      %v855 = vld [vmem:[%s3 + $0x2c] sm:$0xf]
      %v856 = vld [vmem:[%s3 + $0x30] sm:$0xf]
      %v857 = vld [vmem:[%s3 + $0x34] sm:$0xf]
      %v858 = vld [vmem:[%s3 + $0x38] sm:$0xf]
      %v859 = vld [vmem:[%s3 + $0x3c] sm:$0xf]
      %v860 = vld [vmem:[%s3 + $0x40] sm:$0xf]
      %v861 = vld [vmem:[%s3 + $0x44] sm:$0xf]
      %v862 = vld [vmem:[%s3 + $0x48] sm:$0xf]
      %v863 = vld [vmem:[%s3 + $0x4c] sm:$0xf]
      %v864 = vld [vmem:[%s3 + $0x50] sm:$0xf]
      %v865 = vld [vmem:[%s3 + $0x54] sm:$0xf]
      %v866 = vld [vmem:[%s3 + $0x58] sm:$0xf]
      %v867 = vld [vmem:[%s3 + $0x5c] sm:$0xf]
      %v868 = vld [vmem:[%s3 + $0x60] sm:$0xf]
      %v869 = vld [vmem:[%s3 + $0x64] sm:$0xf]
      %v870 = vld [vmem:[%s3 + $0x68] sm:$0xf]
      %v871 = vld [vmem:[%s3 + $0x6c] sm:$0xf]
      %v872 = vld [vmem:[%s3 + $0x70] sm:$0xf]
      %v873 = vld [vmem:[%s3 + $0x74] sm:$0xf]
      %v874 = vld [vmem:[%s3 + $0x78] sm:$0xf]
      %v875 = vld [vmem:[%s3 + $0x7c] sm:$0xf]
      %v876 = vld [vmem:[%s3 + $0x80] sm:$0xf]
      %v877 = vld [vmem:[%s3 + $0x84] sm:$0xf]
      %v878 = vld [vmem:[%s3 + $0x88] sm:$0xf]
      %v879 = vld [vmem:[%s3 + $0x8c] sm:$0xf]
      %v880 = vld [vmem:[%s3 + $0x90] sm:$0xf]
      %v881 = vld [vmem:[%s3 + $0x94] sm:$0xf]
      %v882 = vld [vmem:[%s3 + $0x98] sm:$0xf]
      %v883 = vld [vmem:[%s3 + $0x9c] sm:$0xf]
      %v884 = vld [vmem:[%s3 + $0xa0] sm:$0xf]
      %v885 = vld [vmem:[%s3 + $0xa4] sm:$0xf]
      %v886 = vld [vmem:[%s3 + $0xa8] sm:$0xf]
      %v887 = vld [vmem:[%s3 + $0xac] sm:$0xf]
      %v888 = vld [vmem:[%s3 + $0xb0] sm:$0xf]
      %v889 = vld [vmem:[%s3 + $0xb4] sm:$0xf]
      %v890 = vld [vmem:[%s3 + $0xb8] sm:$0xf]
      %v891 = vld [vmem:[%s3 + $0xbc] sm:$0xf]
      %v892 = vld [vmem:[%s4] sm:$0x1]
      %v894 = vperm.slane %v892, 0
      %v944 = vunpack.c.l.b16 %v844
      %v945 = vunpack.c.l.b16 %v845
      %v946 = vunpack.c.l.b16 %v846
      %v947 = vunpack.c.l.b16 %v847
      %v948 = vunpack.c.l.b16 %v848
      %v949 = vunpack.c.l.b16 %v849
      %v950 = vunpack.c.l.b16 %v850
      %v951 = vunpack.c.l.b16 %v851
      %v952 = vunpack.c.l.b16 %v852
      %v953 = vunpack.c.l.b16 %v853
      %v954 = vunpack.c.l.b16 %v854
      %v955 = vunpack.c.l.b16 %v855
      %v956 = vunpack.c.l.b16 %v856
      %v957 = vunpack.c.l.b16 %v857
      %v958 = vunpack.c.l.b16 %v858
      %v959 = vunpack.c.l.b16 %v859
      %v960 = vunpack.c.l.b16 %v860
      %v961 = vunpack.c.l.b16 %v861
      %v962 = vunpack.c.l.b16 %v862
      %v963 = vunpack.c.l.b16 %v863
      %v964 = vunpack.c.l.b16 %v864
      %v965 = vunpack.c.l.b16 %v865
      %v966 = vunpack.c.l.b16 %v866
      %v967 = vunpack.c.l.b16 %v867
      %v968 = vunpack.c.l.b16 %v868
      %v969 = vunpack.c.l.b16 %v869
      %v970 = vunpack.c.l.b16 %v870
      %v971 = vunpack.c.l.b16 %v871
      %v972 = vunpack.c.l.b16 %v872
      %v973 = vunpack.c.l.b16 %v873
      %v974 = vunpack.c.l.b16 %v874
      %v975 = vunpack.c.l.b16 %v875
      %v976 = vunpack.c.l.b16 %v876
      %v977 = vunpack.c.l.b16 %v877
      %v978 = vunpack.c.l.b16 %v878
      %v979 = vunpack.c.l.b16 %v879
      %v980 = vunpack.c.l.b16 %v880
      %v981 = vunpack.c.l.b16 %v881
      %v982 = vunpack.c.l.b16 %v882
      %v983 = vunpack.c.l.b16 %v883
      %v984 = vunpack.c.l.b16 %v884
      %v985 = vunpack.c.l.b16 %v885
      %v986 = vunpack.c.l.b16 %v886
      %v987 = vunpack.c.l.b16 %v887
      %v988 = vunpack.c.l.b16 %v888
      %v989 = vunpack.c.l.b16 %v889
      %v990 = vunpack.c.l.b16 %v890
      %v991 = vunpack.c.l.b16 %v891
      %v992 = vpack.c.b16 %v945, %v944
      %v993 = vpack.c.b16 %v947, %v946
      %v994 = vpack.c.b16 %v949, %v948
      %v995 = vpack.c.b16 %v951, %v950
      %v996 = vpack.c.b16 %v953, %v952
      %v997 = vpack.c.b16 %v955, %v954
      %v998 = vpack.c.b16 %v957, %v956
      %v999 = vpack.c.b16 %v959, %v958
      %v1000 = vpack.c.b16 %v961, %v960
      %v1001 = vpack.c.b16 %v963, %v962
      %v1002 = vpack.c.b16 %v965, %v964
      %v1003 = vpack.c.b16 %v967, %v966
      %v1004 = vpack.c.b16 %v969, %v968
      %v1005 = vpack.c.b16 %v971, %v970
      %v1006 = vpack.c.b16 %v973, %v972
      %v1007 = vpack.c.b16 %v975, %v974
      %v1008 = vpack.c.b16 %v977, %v976
      %v1009 = vpack.c.b16 %v979, %v978
      %v1010 = vpack.c.b16 %v981, %v980
      %v1011 = vpack.c.b16 %v983, %v982
      %v1012 = vpack.c.b16 %v985, %v984
      %v1013 = vpack.c.b16 %v987, %v986
      %v1014 = vpack.c.b16 %v989, %v988
      %v1015 = vpack.c.b16 %v991, %v990
      %1040 = vmatpush.bf16.msra.mxu0 %v999
      %1041 = vmatpush.bf16.msra.mxu0 %v998
      %1042 = vmatpush.bf16.msra.mxu0 %v997
      %1043 = vmatpush.bf16.msra.mxu0 %v996
      %1044 = vmatpush.bf16.msra.mxu0 %v995
      %1045 = vmatpush.bf16.msra.mxu0 %v994
      %1046 = vmatpush.bf16.msra.mxu0 %v993
      %1047 = vmatpush.bf16.msra.mxu0 %v992
      %1048 = vmatmul.bf16.gmra.mxu0 %v840
      %v1049 = vpop.f32.mrf.mxu0
      %v1050 = vadd.f32 %v894, %v1049
      %v1051 = vpop.f32.mrf.mxu0
      %v1052 = vadd.f32 %v894, %v1051
      %1053 = vmatmul.bf16.gmra.mxu0 %v842
      %v1054 = vpop.f32.mrf.mxu0
      %v1055 = vadd.f32 %v894, %v1054
      %v1056 = vpop.f32.mrf.mxu0
      %v1057 = vadd.f32 %v894, %v1056
      %1058 = vdwg.mxu0
      %1059 = vmatpush.bf16.msra.mxu0 %v1007
      %1060 = vmatpush.bf16.msra.mxu0 %v1006
      %1061 = vmatpush.bf16.msra.mxu0 %v1005
      %1062 = vmatpush.bf16.msra.mxu0 %v1004
      %1063 = vmatpush.bf16.msra.mxu0 %v1003
      %1064 = vmatpush.bf16.msra.mxu0 %v1002
      %1065 = vmatpush.bf16.msra.mxu0 %v1001
      %1066 = vmatpush.bf16.msra.mxu0 %v1000
      %1067 = vmatmul.bf16.gmra.mxu0 %v675
      %v1068 = vpop.f32.mrf.mxu0
      %v1069 = vadd.f32 %v1050, %v1068
      %v1070 = vpop.f32.mrf.mxu0
      %v1071 = vadd.f32 %v1052, %v1070
      %1072 = vmatmul.bf16.gmra.mxu0 %v676
      %v1073 = vpop.f32.mrf.mxu0
      %v1074 = vadd.f32 %v1055, %v1073
      %v1075 = vpop.f32.mrf.mxu0
      %v1076 = vadd.f32 %v1057, %v1075
      %1077 = vdwg.mxu0
      %1078 = vmatpush.bf16.msra.mxu0 %v1015
      %1079 = vmatpush.bf16.msra.mxu0 %v1014
      %1080 = vmatpush.bf16.msra.mxu0 %v1013
      %1081 = vmatpush.bf16.msra.mxu0 %v1012
      %1082 = vmatpush.bf16.msra.mxu0 %v1011
      %1083 = vmatpush.bf16.msra.mxu0 %v1010
      %1084 = vmatpush.bf16.msra.mxu0 %v1009
      %1085 = vmatpush.bf16.msra.mxu0 %v1008
      %1086 = vmatmul.bf16.gmra.mxu0 %v841
      %v1087 = vpop.f32.mrf.mxu0
      %v1088 = vadd.f32 %v1069, %v1087
      %v1089 = vpop.f32.mrf.mxu0
      %v1090 = vadd.f32 %v1071, %v1089
      %1091 = vmatmul.bf16.gmra.mxu0 %v843
      %v1092 = vpop.f32.mrf.mxu0
      %v1093 = vadd.f32 %v1074, %v1092
      %v1094 = vpop.f32.mrf.mxu0
      %v1095 = vadd.f32 %v1076, %v1094
      %1096 = vdwg.mxu0
      %v1097 = vmul.f32 %v1088, 0.01
      %v1098 = vmul.f32 %v1090, 0.01
      %v1099 = vmul.f32 %v1093, 0.01
      %v1100 = vmul.f32 %v1095, 0.01
      %v1101 = vmax.f32 %v1088, %v1097
      %v1102 = vmax.f32 %v1090, %v1098
      %v1103 = vmax.f32 %v1093, %v1099
      %v1104 = vmax.f32 %v1095, %v1100
      %v1105 = vld [vmem:[%s5] sm:$0x1]
      %v1107 = vperm.slane %v1105, 0
      %v1109 = vadd.f32 %v1101, %v1107
      %v1110 = vadd.f32 %v1102, %v1107
      %v1111 = vadd.f32 %v1103, %v1107
      %v1112 = vadd.f32 %v1104, %v1107
      %1113 = vst [vmem:[#allocation2 + $0x2] sm:$0xff] %v1109
      %1114 = vst [vmem:[#allocation2 + $0xa] sm:$0xff] %v1110
      %1115 = vst [vmem:[#allocation2 + $0x12] sm:$0xff] %v1111
      %1116 = vst [vmem:[#allocation2 + $0x1a] sm:$0xff] %v1112
      %v1117 = vld [vmem:[#allocation2] sm:$0xff]
      %v1118 = vld [vmem:[#allocation2 + $0x8] sm:$0xff]
      %v1119 = vld [vmem:[#allocation2 + $0x10] sm:$0xff]
      %v1120 = vld [vmem:[#allocation2 + $0x18] sm:$0xff]
      %v1121 = vadd.s32 %v667, 4294967294
      %v1122 = vadd.s32 %v668, 4294967294
      %v1123 = vadd.s32 %v669, 4294967294
      %v1124 = vadd.s32 %v670, 4294967294
      %vm1125 = vcmp.ge.s32.totalorder %v1121, 0
      %vm1126 = vcmp.ge.s32.totalorder %v1122, 0
      %vm1127 = vcmp.ge.s32.totalorder %v1123, 0
      %vm1128 = vcmp.ge.s32.totalorder %v1124, 0
      %vm1129 = vcmp.lt.s32.totalorder %v1121, 16
      %vm1130 = vcmp.lt.s32.totalorder %v1122, 16
      %vm1131 = vcmp.lt.s32.totalorder %v1123, 16
      %vm1132 = vcmp.lt.s32.totalorder %v1124, 16
      %vm1133 = vmand %vm1125, %vm1129
      %vm1134 = vmand %vm1126, %vm1130
      %vm1135 = vmand %vm1127, %vm1131
      %vm1136 = vmand %vm1128, %vm1132
      %v1137 = vsel %vm1133, 1, 0
      %v1138 = vsel %vm1134, 1, 0
      %v1139 = vsel %vm1135, 1, 0
      %v1140 = vsel %vm1136, 1, 0
      %vm1141 = vcmp.eq.s32.totalorder %v1137, 1
      %vm1142 = vcmp.eq.s32.totalorder %v1138, 1
      %vm1143 = vcmp.eq.s32.totalorder %v1139, 1
      %vm1144 = vcmp.eq.s32.totalorder %v1140, 1
      %v1145 = vsel %vm1141, %v1117, 0.0
      %v1146 = vsel %vm1142, %v1118, 0.0
      %v1147 = vsel %vm1143, %v1119, 0.0
      %v1148 = vsel %vm1144, %v1120, 0.0
      %v1149 = vld [vmem:[#allocation2 + $0x4] sm:$0xff]
      %v1150 = vld [vmem:[#allocation2 + $0xc] sm:$0xff]
      %v1151 = vld [vmem:[#allocation2 + $0x14] sm:$0xff]
      %v1152 = vld [vmem:[#allocation2 + $0x1c] sm:$0xff]
      %v1153 = vadd.s32 %v667, 2
      %v1154 = vadd.s32 %v668, 2
      %v1155 = vadd.s32 %v669, 2
      %v1156 = vadd.s32 %v670, 2
      %vm1157 = vcmp.ge.s32.totalorder %v1153, 0
      %vm1158 = vcmp.ge.s32.totalorder %v1154, 0
      %vm1159 = vcmp.ge.s32.totalorder %v1155, 0
      %vm1160 = vcmp.ge.s32.totalorder %v1156, 0
      %vm1161 = vcmp.lt.s32.totalorder %v1153, 16
      %vm1162 = vcmp.lt.s32.totalorder %v1154, 16
      %vm1163 = vcmp.lt.s32.totalorder %v1155, 16
      %vm1164 = vcmp.lt.s32.totalorder %v1156, 16
      %vm1165 = vmand %vm1157, %vm1161
      %vm1166 = vmand %vm1158, %vm1162
      %vm1167 = vmand %vm1159, %vm1163
      %vm1168 = vmand %vm1160, %vm1164
      %v1169 = vsel %vm1165, 1, 0
      %v1170 = vsel %vm1166, 1, 0
      %v1171 = vsel %vm1167, 1, 0
      %v1172 = vsel %vm1168, 1, 0
      %vm1173 = vcmp.eq.s32.totalorder %v1169, 1
      %vm1174 = vcmp.eq.s32.totalorder %v1170, 1
      %vm1175 = vcmp.eq.s32.totalorder %v1171, 1
      %vm1176 = vcmp.eq.s32.totalorder %v1172, 1
      %v1177 = vsel %vm1173, %v1149, 0.0
      %v1178 = vsel %vm1174, %v1150, 0.0
      %v1179 = vsel %vm1175, %v1151, 0.0
      %v1180 = vsel %vm1176, %v1152, 0.0
      %v1181 = vpack.c.bf16 %v1146, %v1145
      %v1182 = vpack.c.bf16 %v1110, %v1109
      %v1183 = vpack.c.bf16 %v1178, %v1177
      %v1184 = vpack.c.bf16 %v1148, %v1147
      %v1185 = vpack.c.bf16 %v1112, %v1111
      %v1186 = vpack.c.bf16 %v1180, %v1179
      %v1187 = vld [vmem:[%s6] sm:$0xf]
      %v1188 = vld [vmem:[%s6 + $0x4] sm:$0xf]
      %v1189 = vld [vmem:[%s6 + $0x8] sm:$0xf]
      %v1190 = vld [vmem:[%s6 + $0xc] sm:$0xf]
      %v1191 = vld [vmem:[%s6 + $0x10] sm:$0xf]
      %v1192 = vld [vmem:[%s6 + $0x14] sm:$0xf]
      %v1193 = vld [vmem:[%s6 + $0x18] sm:$0xf]
      %v1194 = vld [vmem:[%s6 + $0x1c] sm:$0xf]
      %v1195 = vld [vmem:[%s6 + $0x20] sm:$0xf]
      %v1196 = vld [vmem:[%s6 + $0x24] sm:$0xf]
      %v1197 = vld [vmem:[%s6 + $0x28] sm:$0xf]
      %v1198 = vld [vmem:[%s6 + $0x2c] sm:$0xf]
      %v1199 = vld [vmem:[%s6 + $0x30] sm:$0xf]
      %v1200 = vld [vmem:[%s6 + $0x34] sm:$0xf]
      %v1201 = vld [vmem:[%s6 + $0x38] sm:$0xf]
      %v1202 = vld [vmem:[%s6 + $0x3c] sm:$0xf]
      %v1203 = vld [vmem:[%s6 + $0x40] sm:$0xf]
      %v1204 = vld [vmem:[%s6 + $0x44] sm:$0xf]
      %v1205 = vld [vmem:[%s6 + $0x48] sm:$0xf]
      %v1206 = vld [vmem:[%s6 + $0x4c] sm:$0xf]
      %v1207 = vld [vmem:[%s6 + $0x50] sm:$0xf]
      %v1208 = vld [vmem:[%s6 + $0x54] sm:$0xf]
      %v1209 = vld [vmem:[%s6 + $0x58] sm:$0xf]
      %v1210 = vld [vmem:[%s6 + $0x5c] sm:$0xf]
      %v1211 = vld [vmem:[%s6 + $0x60] sm:$0xf]
      %v1212 = vld [vmem:[%s6 + $0x64] sm:$0xf]
      %v1213 = vld [vmem:[%s6 + $0x68] sm:$0xf]
      %v1214 = vld [vmem:[%s6 + $0x6c] sm:$0xf]
      %v1215 = vld [vmem:[%s6 + $0x70] sm:$0xf]
      %v1216 = vld [vmem:[%s6 + $0x74] sm:$0xf]
      %v1217 = vld [vmem:[%s6 + $0x78] sm:$0xf]
      %v1218 = vld [vmem:[%s6 + $0x7c] sm:$0xf]
      %v1219 = vld [vmem:[%s6 + $0x80] sm:$0xf]
      %v1220 = vld [vmem:[%s6 + $0x84] sm:$0xf]
      %v1221 = vld [vmem:[%s6 + $0x88] sm:$0xf]
      %v1222 = vld [vmem:[%s6 + $0x8c] sm:$0xf]
      %v1223 = vld [vmem:[%s6 + $0x90] sm:$0xf]
      %v1224 = vld [vmem:[%s6 + $0x94] sm:$0xf]
      %v1225 = vld [vmem:[%s6 + $0x98] sm:$0xf]
      %v1226 = vld [vmem:[%s6 + $0x9c] sm:$0xf]
      %v1227 = vld [vmem:[%s6 + $0xa0] sm:$0xf]
      %v1228 = vld [vmem:[%s6 + $0xa4] sm:$0xf]
      %v1229 = vld [vmem:[%s6 + $0xa8] sm:$0xf]
      %v1230 = vld [vmem:[%s6 + $0xac] sm:$0xf]
      %v1231 = vld [vmem:[%s6 + $0xb0] sm:$0xf]
      %v1232 = vld [vmem:[%s6 + $0xb4] sm:$0xf]
      %v1233 = vld [vmem:[%s6 + $0xb8] sm:$0xf]
      %v1234 = vld [vmem:[%s6 + $0xbc] sm:$0xf]
      %v1235 = vld [vmem:[%s7] sm:$0x1]
      %v1237 = vperm.slane %v1235, 0
      %v1287 = vunpack.c.l.b16 %v1187
      %v1288 = vunpack.c.l.b16 %v1188
      %v1289 = vunpack.c.l.b16 %v1189
      %v1290 = vunpack.c.l.b16 %v1190
      %v1291 = vunpack.c.l.b16 %v1191
      %v1292 = vunpack.c.l.b16 %v1192
      %v1293 = vunpack.c.l.b16 %v1193
      %v1294 = vunpack.c.l.b16 %v1194
      %v1295 = vunpack.c.l.b16 %v1195
      %v1296 = vunpack.c.l.b16 %v1196
      %v1297 = vunpack.c.l.b16 %v1197
      %v1298 = vunpack.c.l.b16 %v1198
      %v1299 = vunpack.c.l.b16 %v1199
      %v1300 = vunpack.c.l.b16 %v1200
      %v1301 = vunpack.c.l.b16 %v1201
      %v1302 = vunpack.c.l.b16 %v1202
      %v1303 = vunpack.c.l.b16 %v1203
      %v1304 = vunpack.c.l.b16 %v1204
      %v1305 = vunpack.c.l.b16 %v1205
      %v1306 = vunpack.c.l.b16 %v1206
      %v1307 = vunpack.c.l.b16 %v1207
      %v1308 = vunpack.c.l.b16 %v1208
      %v1309 = vunpack.c.l.b16 %v1209
      %v1310 = vunpack.c.l.b16 %v1210
      %v1311 = vunpack.c.l.b16 %v1211
      %v1312 = vunpack.c.l.b16 %v1212
      %v1313 = vunpack.c.l.b16 %v1213
      %v1314 = vunpack.c.l.b16 %v1214
      %v1315 = vunpack.c.l.b16 %v1215
      %v1316 = vunpack.c.l.b16 %v1216
      %v1317 = vunpack.c.l.b16 %v1217
      %v1318 = vunpack.c.l.b16 %v1218
      %v1319 = vunpack.c.l.b16 %v1219
      %v1320 = vunpack.c.l.b16 %v1220
      %v1321 = vunpack.c.l.b16 %v1221
      %v1322 = vunpack.c.l.b16 %v1222
      %v1323 = vunpack.c.l.b16 %v1223
      %v1324 = vunpack.c.l.b16 %v1224
      %v1325 = vunpack.c.l.b16 %v1225
      %v1326 = vunpack.c.l.b16 %v1226
      %v1327 = vunpack.c.l.b16 %v1227
      %v1328 = vunpack.c.l.b16 %v1228
      %v1329 = vunpack.c.l.b16 %v1229
      %v1330 = vunpack.c.l.b16 %v1230
      %v1331 = vunpack.c.l.b16 %v1231
      %v1332 = vunpack.c.l.b16 %v1232
      %v1333 = vunpack.c.l.b16 %v1233
      %v1334 = vunpack.c.l.b16 %v1234
      %v1335 = vpack.c.b16 %v1288, %v1287
      %v1336 = vpack.c.b16 %v1290, %v1289
      %v1337 = vpack.c.b16 %v1292, %v1291
      %v1338 = vpack.c.b16 %v1294, %v1293
      %v1339 = vpack.c.b16 %v1296, %v1295
      %v1340 = vpack.c.b16 %v1298, %v1297
      %v1341 = vpack.c.b16 %v1300, %v1299
      %v1342 = vpack.c.b16 %v1302, %v1301
      %v1343 = vpack.c.b16 %v1304, %v1303
      %v1344 = vpack.c.b16 %v1306, %v1305
      %v1345 = vpack.c.b16 %v1308, %v1307
      %v1346 = vpack.c.b16 %v1310, %v1309
      %v1347 = vpack.c.b16 %v1312, %v1311
      %v1348 = vpack.c.b16 %v1314, %v1313
      %v1349 = vpack.c.b16 %v1316, %v1315
      %v1350 = vpack.c.b16 %v1318, %v1317
      %v1351 = vpack.c.b16 %v1320, %v1319
      %v1352 = vpack.c.b16 %v1322, %v1321
      %v1353 = vpack.c.b16 %v1324, %v1323
      %v1354 = vpack.c.b16 %v1326, %v1325
      %v1355 = vpack.c.b16 %v1328, %v1327
      %v1356 = vpack.c.b16 %v1330, %v1329
      %v1357 = vpack.c.b16 %v1332, %v1331
      %v1358 = vpack.c.b16 %v1334, %v1333
      %1383 = vmatpush.bf16.msra.mxu0 %v1342
      %1384 = vmatpush.bf16.msra.mxu0 %v1341
      %1385 = vmatpush.bf16.msra.mxu0 %v1340
      %1386 = vmatpush.bf16.msra.mxu0 %v1339
      %1387 = vmatpush.bf16.msra.mxu0 %v1338
      %1388 = vmatpush.bf16.msra.mxu0 %v1337
      %1389 = vmatpush.bf16.msra.mxu0 %v1336
      %1390 = vmatpush.bf16.msra.mxu0 %v1335
      %1391 = vmatmul.bf16.gmra.mxu0 %v1181
      %v1392 = vpop.f32.mrf.mxu0
      %v1393 = vadd.f32 %v1237, %v1392
      %v1394 = vpop.f32.mrf.mxu0
      %v1395 = vadd.f32 %v1237, %v1394
      %1396 = vmatmul.bf16.gmra.mxu0 %v1184
      %v1397 = vpop.f32.mrf.mxu0
      %v1398 = vadd.f32 %v1237, %v1397
      %v1399 = vpop.f32.mrf.mxu0
      %v1400 = vadd.f32 %v1237, %v1399
      %1401 = vdwg.mxu0
      %1402 = vmatpush.bf16.msra.mxu0 %v1350
      %1403 = vmatpush.bf16.msra.mxu0 %v1349
      %1404 = vmatpush.bf16.msra.mxu0 %v1348
      %1405 = vmatpush.bf16.msra.mxu0 %v1347
      %1406 = vmatpush.bf16.msra.mxu0 %v1346
      %1407 = vmatpush.bf16.msra.mxu0 %v1345
      %1408 = vmatpush.bf16.msra.mxu0 %v1344
      %1409 = vmatpush.bf16.msra.mxu0 %v1343
      %1410 = vmatmul.bf16.gmra.mxu0 %v1182
      %v1411 = vpop.f32.mrf.mxu0
      %v1412 = vadd.f32 %v1393, %v1411
      %v1413 = vpop.f32.mrf.mxu0
      %v1414 = vadd.f32 %v1395, %v1413
      %1415 = vmatmul.bf16.gmra.mxu0 %v1185
      %v1416 = vpop.f32.mrf.mxu0
      %v1417 = vadd.f32 %v1398, %v1416
      %v1418 = vpop.f32.mrf.mxu0
      %v1419 = vadd.f32 %v1400, %v1418
      %1420 = vdwg.mxu0
      %1421 = vmatpush.bf16.msra.mxu0 %v1358
      %1422 = vmatpush.bf16.msra.mxu0 %v1357
      %1423 = vmatpush.bf16.msra.mxu0 %v1356
      %1424 = vmatpush.bf16.msra.mxu0 %v1355
      %1425 = vmatpush.bf16.msra.mxu0 %v1354
      %1426 = vmatpush.bf16.msra.mxu0 %v1353
      %1427 = vmatpush.bf16.msra.mxu0 %v1352
      %1428 = vmatpush.bf16.msra.mxu0 %v1351
      %1429 = vmatmul.bf16.gmra.mxu0 %v1183
      %v1430 = vpop.f32.mrf.mxu0
      %v1431 = vadd.f32 %v1412, %v1430
      %v1432 = vpop.f32.mrf.mxu0
      %v1433 = vadd.f32 %v1414, %v1432
      %1434 = vmatmul.bf16.gmra.mxu0 %v1186
      %v1435 = vpop.f32.mrf.mxu0
      %v1436 = vadd.f32 %v1417, %v1435
      %v1437 = vpop.f32.mrf.mxu0
      %v1438 = vadd.f32 %v1419, %v1437
      %1439 = vdwg.mxu0
      %v1440 = vmul.f32 %v1431, 0.01
      %v1441 = vmul.f32 %v1433, 0.01
      %v1442 = vmul.f32 %v1436, 0.01
      %v1443 = vmul.f32 %v1438, 0.01
      %v1444 = vmax.f32 %v1431, %v1440
      %v1445 = vmax.f32 %v1433, %v1441
      %v1446 = vmax.f32 %v1436, %v1442
      %v1447 = vmax.f32 %v1438, %v1443
      %v1448 = vld [vmem:[%s8] sm:$0x1]
      %v1450 = vperm.slane %v1448, 0
      %v1452 = vadd.f32 %v1444, %v1450
      %v1453 = vadd.f32 %v1445, %v1450
      %v1454 = vadd.f32 %v1446, %v1450
      %v1455 = vadd.f32 %v1447, %v1450
      %1456 = vst [vmem:[#allocation2 + $0x2] sm:$0xff] %v1452
      %1457 = vst [vmem:[#allocation2 + $0xa] sm:$0xff] %v1453
      %1458 = vst [vmem:[#allocation2 + $0x12] sm:$0xff] %v1454
      %1459 = vst [vmem:[#allocation2 + $0x1a] sm:$0xff] %v1455
      %v1460 = vld [vmem:[#allocation2 + $0x1] sm:$0xff]
      %v1461 = vld [vmem:[#allocation2 + $0x9] sm:$0xff]
      %v1462 = vld [vmem:[#allocation2 + $0x11] sm:$0xff]
      %v1463 = vld [vmem:[#allocation2 + $0x19] sm:$0xff]
      %v1464 = vsel %vm800, %v1460, 0.0
      %v1465 = vsel %vm801, %v1461, 0.0
      %v1466 = vsel %vm802, %v1462, 0.0
      %v1467 = vsel %vm803, %v1463, 0.0
      %v1468 = vld [vmem:[#allocation2 + $0x3] sm:$0xff]
      %v1469 = vld [vmem:[#allocation2 + $0xb] sm:$0xff]
      %v1470 = vld [vmem:[#allocation2 + $0x13] sm:$0xff]
      %v1471 = vld [vmem:[#allocation2 + $0x1b] sm:$0xff]
      %v1472 = vsel %vm832, %v1468, 0.0
      %v1473 = vsel %vm833, %v1469, 0.0
      %v1474 = vsel %vm834, %v1470, 0.0
      %v1475 = vsel %vm835, %v1471, 0.0
      %v1476 = vpack.c.bf16 %v1465, %v1464
      %v1477 = vpack.c.bf16 %v1473, %v1472
      %v1478 = vpack.c.bf16 %v1467, %v1466
      %v1479 = vpack.c.bf16 %v1475, %v1474
      %v1480 = vld [vmem:[%s9] sm:$0xf]
      %v1481 = vld [vmem:[%s9 + $0x4] sm:$0xf]
      %v1482 = vld [vmem:[%s9 + $0x8] sm:$0xf]
      %v1483 = vld [vmem:[%s9 + $0xc] sm:$0xf]
      %v1484 = vld [vmem:[%s9 + $0x10] sm:$0xf]
      %v1485 = vld [vmem:[%s9 + $0x14] sm:$0xf]
      %v1486 = vld [vmem:[%s9 + $0x18] sm:$0xf]
      %v1487 = vld [vmem:[%s9 + $0x1c] sm:$0xf]
      %v1488 = vld [vmem:[%s9 + $0x20] sm:$0xf]
      %v1489 = vld [vmem:[%s9 + $0x24] sm:$0xf]
      %v1490 = vld [vmem:[%s9 + $0x28] sm:$0xf]
      %v1491 = vld [vmem:[%s9 + $0x2c] sm:$0xf]
      %v1492 = vld [vmem:[%s9 + $0x30] sm:$0xf]
      %v1493 = vld [vmem:[%s9 + $0x34] sm:$0xf]
      %v1494 = vld [vmem:[%s9 + $0x38] sm:$0xf]
      %v1495 = vld [vmem:[%s9 + $0x3c] sm:$0xf]
      %v1496 = vld [vmem:[%s9 + $0x40] sm:$0xf]
      %v1497 = vld [vmem:[%s9 + $0x44] sm:$0xf]
      %v1498 = vld [vmem:[%s9 + $0x48] sm:$0xf]
      %v1499 = vld [vmem:[%s9 + $0x4c] sm:$0xf]
      %v1500 = vld [vmem:[%s9 + $0x50] sm:$0xf]
      %v1501 = vld [vmem:[%s9 + $0x54] sm:$0xf]
      %v1502 = vld [vmem:[%s9 + $0x58] sm:$0xf]
      %v1503 = vld [vmem:[%s9 + $0x5c] sm:$0xf]
      %v1504 = vld [vmem:[%s9 + $0x60] sm:$0xf]
      %v1505 = vld [vmem:[%s9 + $0x64] sm:$0xf]
      %v1506 = vld [vmem:[%s9 + $0x68] sm:$0xf]
      %v1507 = vld [vmem:[%s9 + $0x6c] sm:$0xf]
      %v1508 = vld [vmem:[%s9 + $0x70] sm:$0xf]
      %v1509 = vld [vmem:[%s9 + $0x74] sm:$0xf]
      %v1510 = vld [vmem:[%s9 + $0x78] sm:$0xf]
      %v1511 = vld [vmem:[%s9 + $0x7c] sm:$0xf]
      %v1512 = vld [vmem:[%s10] sm:$0x1]
      %v1514 = vperm.slane %v1512, 0
      %v1548 = vunpack.c.l.b16 %v1480
      %v1549 = vunpack.c.l.b16 %v1481
      %v1550 = vunpack.c.l.b16 %v1482
      %v1551 = vunpack.c.l.b16 %v1483
      %v1552 = vunpack.c.l.b16 %v1484
      %v1553 = vunpack.c.l.b16 %v1485
      %v1554 = vunpack.c.l.b16 %v1486
      %v1555 = vunpack.c.l.b16 %v1487
      %v1556 = vunpack.c.l.b16 %v1488
      %v1557 = vunpack.c.l.b16 %v1489
      %v1558 = vunpack.c.l.b16 %v1490
      %v1559 = vunpack.c.l.b16 %v1491
      %v1560 = vunpack.c.l.b16 %v1492
      %v1561 = vunpack.c.l.b16 %v1493
      %v1562 = vunpack.c.l.b16 %v1494
      %v1563 = vunpack.c.l.b16 %v1495
      %v1564 = vunpack.c.l.b16 %v1496
      %v1565 = vunpack.c.l.b16 %v1497
      %v1566 = vunpack.c.l.b16 %v1498
      %v1567 = vunpack.c.l.b16 %v1499
      %v1568 = vunpack.c.l.b16 %v1500
      %v1569 = vunpack.c.l.b16 %v1501
      %v1570 = vunpack.c.l.b16 %v1502
      %v1571 = vunpack.c.l.b16 %v1503
      %v1572 = vunpack.c.l.b16 %v1504
      %v1573 = vunpack.c.l.b16 %v1505
      %v1574 = vunpack.c.l.b16 %v1506
      %v1575 = vunpack.c.l.b16 %v1507
      %v1576 = vunpack.c.l.b16 %v1508
      %v1577 = vunpack.c.l.b16 %v1509
      %v1578 = vunpack.c.l.b16 %v1510
      %v1579 = vunpack.c.l.b16 %v1511
      %v1580 = vpack.c.b16 %v1549, %v1548
      %v1581 = vpack.c.b16 %v1551, %v1550
      %v1582 = vpack.c.b16 %v1553, %v1552
      %v1583 = vpack.c.b16 %v1555, %v1554
      %v1584 = vpack.c.b16 %v1557, %v1556
      %v1585 = vpack.c.b16 %v1559, %v1558
      %v1586 = vpack.c.b16 %v1561, %v1560
      %v1587 = vpack.c.b16 %v1563, %v1562
      %v1588 = vpack.c.b16 %v1565, %v1564
      %v1589 = vpack.c.b16 %v1567, %v1566
      %v1590 = vpack.c.b16 %v1569, %v1568
      %v1591 = vpack.c.b16 %v1571, %v1570
      %v1592 = vpack.c.b16 %v1573, %v1572
      %v1593 = vpack.c.b16 %v1575, %v1574
      %v1594 = vpack.c.b16 %v1577, %v1576
      %v1595 = vpack.c.b16 %v1579, %v1578
      %1612 = vmatpush.bf16.msra.mxu0 %v1587
      %1613 = vmatpush.bf16.msra.mxu0 %v1586
      %1614 = vmatpush.bf16.msra.mxu0 %v1585
      %1615 = vmatpush.bf16.msra.mxu0 %v1584
      %1616 = vmatpush.bf16.msra.mxu0 %v1583
      %1617 = vmatpush.bf16.msra.mxu0 %v1582
      %1618 = vmatpush.bf16.msra.mxu0 %v1581
      %1619 = vmatpush.bf16.msra.mxu0 %v1580
      %1620 = vmatmul.bf16.gmra.mxu0 %v1476
      %v1621 = vpop.f32.mrf.mxu0
      %v1622 = vadd.f32 %v1514, %v1621
      %v1623 = vpop.f32.mrf.mxu0
      %v1624 = vadd.f32 %v1514, %v1623
      %1625 = vmatmul.bf16.gmra.mxu0 %v1478
      %v1626 = vpop.f32.mrf.mxu0
      %v1627 = vadd.f32 %v1514, %v1626
      %v1628 = vpop.f32.mrf.mxu0
      %v1629 = vadd.f32 %v1514, %v1628
      %1630 = vdwg.mxu0
      %1631 = vmatpush.bf16.msra.mxu0 %v1595
      %1632 = vmatpush.bf16.msra.mxu0 %v1594
      %1633 = vmatpush.bf16.msra.mxu0 %v1593
      %1634 = vmatpush.bf16.msra.mxu0 %v1592
      %1635 = vmatpush.bf16.msra.mxu0 %v1591
      %1636 = vmatpush.bf16.msra.mxu0 %v1590
      %1637 = vmatpush.bf16.msra.mxu0 %v1589
      %1638 = vmatpush.bf16.msra.mxu0 %v1588
      %1639 = vmatmul.bf16.gmra.mxu0 %v1477
      %v1640 = vpop.f32.mrf.mxu0
      %v1641 = vadd.f32 %v1622, %v1640
      %v1642 = vpop.f32.mrf.mxu0
      %v1643 = vadd.f32 %v1624, %v1642
      %1644 = vmatmul.bf16.gmra.mxu0 %v1479
      %v1645 = vpop.f32.mrf.mxu0
      %v1646 = vadd.f32 %v1627, %v1645
      %v1647 = vpop.f32.mrf.mxu0
      %v1648 = vadd.f32 %v1629, %v1647
      %1649 = vdwg.mxu0
      %v1650 = vmul.f32 %v1641, 0.01
      %v1651 = vmul.f32 %v1643, 0.01
      %v1652 = vmul.f32 %v1646, 0.01
      %v1653 = vmul.f32 %v1648, 0.01
      %v1654 = vmax.f32 %v1641, %v1650
      %v1655 = vmax.f32 %v1643, %v1651
      %v1656 = vmax.f32 %v1646, %v1652
      %v1657 = vmax.f32 %v1648, %v1653
      %v1658 = vld [vmem:[%s11] sm:$0x1]
      %v1660 = vperm.slane %v1658, 0
      %v1662 = vadd.f32 %v1654, %v1660
      %v1663 = vadd.f32 %v1655, %v1660
      %v1664 = vadd.f32 %v1656, %v1660
      %v1665 = vadd.f32 %v1657, %v1660
      %v1666 = vpack.c.bf16 %v1453, %v1452
      %v1667 = vpack.c.bf16 %v1663, %v1662
      %v1668 = vpack.c.bf16 %v1455, %v1454
      %v1669 = vpack.c.bf16 %v1665, %v1664
      %v1670 = vld [vmem:[%s12] sm:$0xf]
      %v1671 = vld [vmem:[%s12 + $0x4] sm:$0xf]
      %v1672 = vld [vmem:[%s12 + $0x8] sm:$0xf]
      %v1673 = vld [vmem:[%s12 + $0xc] sm:$0xf]
      %v1674 = vld [vmem:[%s12 + $0x10] sm:$0xf]
      %v1675 = vld [vmem:[%s12 + $0x14] sm:$0xf]
      %v1676 = vld [vmem:[%s12 + $0x18] sm:$0xf]
      %v1677 = vld [vmem:[%s12 + $0x1c] sm:$0xf]
      %v1678 = vld [vmem:[%s12 + $0x20] sm:$0xf]
      %v1679 = vld [vmem:[%s12 + $0x24] sm:$0xf]
      %v1680 = vld [vmem:[%s12 + $0x28] sm:$0xf]
      %v1681 = vld [vmem:[%s12 + $0x2c] sm:$0xf]
      %v1682 = vld [vmem:[%s12 + $0x30] sm:$0xf]
      %v1683 = vld [vmem:[%s12 + $0x34] sm:$0xf]
      %v1684 = vld [vmem:[%s12 + $0x38] sm:$0xf]
      %v1685 = vld [vmem:[%s12 + $0x3c] sm:$0xf]
      %v1686 = vld [vmem:[%s12 + $0x40] sm:$0xf]
      %v1687 = vld [vmem:[%s12 + $0x44] sm:$0xf]
      %v1688 = vld [vmem:[%s12 + $0x48] sm:$0xf]
      %v1689 = vld [vmem:[%s12 + $0x4c] sm:$0xf]
      %v1690 = vld [vmem:[%s12 + $0x50] sm:$0xf]
      %v1691 = vld [vmem:[%s12 + $0x54] sm:$0xf]
      %v1692 = vld [vmem:[%s12 + $0x58] sm:$0xf]
      %v1693 = vld [vmem:[%s12 + $0x5c] sm:$0xf]
      %v1694 = vld [vmem:[%s12 + $0x60] sm:$0xf]
      %v1695 = vld [vmem:[%s12 + $0x64] sm:$0xf]
      %v1696 = vld [vmem:[%s12 + $0x68] sm:$0xf]
      %v1697 = vld [vmem:[%s12 + $0x6c] sm:$0xf]
      %v1698 = vld [vmem:[%s12 + $0x70] sm:$0xf]
      %v1699 = vld [vmem:[%s12 + $0x74] sm:$0xf]
      %v1700 = vld [vmem:[%s12 + $0x78] sm:$0xf]
      %v1701 = vld [vmem:[%s12 + $0x7c] sm:$0xf]
      %v1702 = vld [vmem:[%s12 + $0x80] sm:$0xf]
      %v1703 = vld [vmem:[%s12 + $0x84] sm:$0xf]
      %v1704 = vld [vmem:[%s12 + $0x88] sm:$0xf]
      %v1705 = vld [vmem:[%s12 + $0x8c] sm:$0xf]
      %v1706 = vld [vmem:[%s12 + $0x90] sm:$0xf]
      %v1707 = vld [vmem:[%s12 + $0x94] sm:$0xf]
      %v1708 = vld [vmem:[%s12 + $0x98] sm:$0xf]
      %v1709 = vld [vmem:[%s12 + $0x9c] sm:$0xf]
      %v1710 = vld [vmem:[%s12 + $0xa0] sm:$0xf]
      %v1711 = vld [vmem:[%s12 + $0xa4] sm:$0xf]
      %v1712 = vld [vmem:[%s12 + $0xa8] sm:$0xf]
      %v1713 = vld [vmem:[%s12 + $0xac] sm:$0xf]
      %v1714 = vld [vmem:[%s12 + $0xb0] sm:$0xf]
      %v1715 = vld [vmem:[%s12 + $0xb4] sm:$0xf]
      %v1716 = vld [vmem:[%s12 + $0xb8] sm:$0xf]
      %v1717 = vld [vmem:[%s12 + $0xbc] sm:$0xf]
      %v1718 = vld [vmem:[%s13] sm:$0x1]
      %v1720 = vperm.slane %v1718, 0
      %v1770 = vunpack.c.l.b16 %v1670
      %v1771 = vunpack.c.l.b16 %v1671
      %v1772 = vunpack.c.l.b16 %v1672
      %v1773 = vunpack.c.l.b16 %v1673
      %v1774 = vunpack.c.l.b16 %v1674
      %v1775 = vunpack.c.l.b16 %v1675
      %v1776 = vunpack.c.l.b16 %v1676
      %v1777 = vunpack.c.l.b16 %v1677
      %v1778 = vunpack.c.l.b16 %v1678
      %v1779 = vunpack.c.l.b16 %v1679
      %v1780 = vunpack.c.l.b16 %v1680
      %v1781 = vunpack.c.l.b16 %v1681
      %v1782 = vunpack.c.l.b16 %v1682
      %v1783 = vunpack.c.l.b16 %v1683
      %v1784 = vunpack.c.l.b16 %v1684
      %v1785 = vunpack.c.l.b16 %v1685
      %v1786 = vunpack.c.l.b16 %v1686
      %v1787 = vunpack.c.l.b16 %v1687
      %v1788 = vunpack.c.l.b16 %v1688
      %v1789 = vunpack.c.l.b16 %v1689
      %v1790 = vunpack.c.l.b16 %v1690
      %v1791 = vunpack.c.l.b16 %v1691
      %v1792 = vunpack.c.l.b16 %v1692
      %v1793 = vunpack.c.l.b16 %v1693
      %v1794 = vunpack.c.l.b16 %v1694
      %v1795 = vunpack.c.l.b16 %v1695
      %v1796 = vunpack.c.l.b16 %v1696
      %v1797 = vunpack.c.l.b16 %v1697
      %v1798 = vunpack.c.l.b16 %v1698
      %v1799 = vunpack.c.l.b16 %v1699
      %v1800 = vunpack.c.l.b16 %v1700
      %v1801 = vunpack.c.l.b16 %v1701
      %v1802 = vunpack.c.l.b16 %v1702
      %v1803 = vunpack.c.l.b16 %v1703
      %v1804 = vunpack.c.l.b16 %v1704
      %v1805 = vunpack.c.l.b16 %v1705
      %v1806 = vunpack.c.l.b16 %v1706
      %v1807 = vunpack.c.l.b16 %v1707
      %v1808 = vunpack.c.l.b16 %v1708
      %v1809 = vunpack.c.l.b16 %v1709
      %v1810 = vunpack.c.l.b16 %v1710
      %v1811 = vunpack.c.l.b16 %v1711
      %v1812 = vunpack.c.l.b16 %v1712
      %v1813 = vunpack.c.l.b16 %v1713
      %v1814 = vunpack.c.l.b16 %v1714
      %v1815 = vunpack.c.l.b16 %v1715
      %v1816 = vunpack.c.l.b16 %v1716
      %v1817 = vunpack.c.l.b16 %v1717
      %v1818 = vpack.c.b16 %v1771, %v1770
      %v1819 = vpack.c.b16 %v1773, %v1772
      %v1820 = vpack.c.b16 %v1775, %v1774
      %v1821 = vpack.c.b16 %v1777, %v1776
      %v1822 = vpack.c.b16 %v1779, %v1778
      %v1823 = vpack.c.b16 %v1781, %v1780
      %v1824 = vpack.c.b16 %v1783, %v1782
      %v1825 = vpack.c.b16 %v1785, %v1784
      %v1826 = vpack.c.b16 %v1787, %v1786
      %v1827 = vpack.c.b16 %v1789, %v1788
      %v1828 = vpack.c.b16 %v1791, %v1790
      %v1829 = vpack.c.b16 %v1793, %v1792
      %v1830 = vpack.c.b16 %v1795, %v1794
      %v1831 = vpack.c.b16 %v1797, %v1796
      %v1832 = vpack.c.b16 %v1799, %v1798
      %v1833 = vpack.c.b16 %v1801, %v1800
      %v1834 = vpack.c.b16 %v1803, %v1802
      %v1835 = vpack.c.b16 %v1805, %v1804
      %v1836 = vpack.c.b16 %v1807, %v1806
      %v1837 = vpack.c.b16 %v1809, %v1808
      %v1838 = vpack.c.b16 %v1811, %v1810
      %v1839 = vpack.c.b16 %v1813, %v1812
      %v1840 = vpack.c.b16 %v1815, %v1814
      %v1841 = vpack.c.b16 %v1817, %v1816
      %1866 = vmatpush.bf16.msra.mxu0 %v1825
      %1867 = vmatpush.bf16.msra.mxu0 %v1824
      %1868 = vmatpush.bf16.msra.mxu0 %v1823
      %1869 = vmatpush.bf16.msra.mxu0 %v1822
      %1870 = vmatpush.bf16.msra.mxu0 %v1821
      %1871 = vmatpush.bf16.msra.mxu0 %v1820
      %1872 = vmatpush.bf16.msra.mxu0 %v1819
      %1873 = vmatpush.bf16.msra.mxu0 %v1818
      %1874 = vmatmul.bf16.gmra.mxu0 %v1182
      %v1875 = vpop.f32.mrf.mxu0
      %v1876 = vadd.f32 %v1720, %v1875
      %v1877 = vpop.f32.mrf.mxu0
      %v1878 = vadd.f32 %v1720, %v1877
      %1879 = vmatmul.bf16.gmra.mxu0 %v1185
      %v1880 = vpop.f32.mrf.mxu0
      %v1881 = vadd.f32 %v1720, %v1880
      %v1882 = vpop.f32.mrf.mxu0
      %v1883 = vadd.f32 %v1720, %v1882
      %1884 = vdwg.mxu0
      %1885 = vmatpush.bf16.msra.mxu0 %v1833
      %1886 = vmatpush.bf16.msra.mxu0 %v1832
      %1887 = vmatpush.bf16.msra.mxu0 %v1831
      %1888 = vmatpush.bf16.msra.mxu0 %v1830
      %1889 = vmatpush.bf16.msra.mxu0 %v1829
      %1890 = vmatpush.bf16.msra.mxu0 %v1828
      %1891 = vmatpush.bf16.msra.mxu0 %v1827
      %1892 = vmatpush.bf16.msra.mxu0 %v1826
      %1893 = vmatmul.bf16.gmra.mxu0 %v1666
      %v1894 = vpop.f32.mrf.mxu0
      %v1895 = vadd.f32 %v1876, %v1894
      %v1896 = vpop.f32.mrf.mxu0
      %v1897 = vadd.f32 %v1878, %v1896
      %1898 = vmatmul.bf16.gmra.mxu0 %v1668
      %v1899 = vpop.f32.mrf.mxu0
      %v1900 = vadd.f32 %v1881, %v1899
      %v1901 = vpop.f32.mrf.mxu0
      %v1902 = vadd.f32 %v1883, %v1901
      %1903 = vdwg.mxu0
      %1904 = vmatpush.bf16.msra.mxu0 %v1841
      %1905 = vmatpush.bf16.msra.mxu0 %v1840
      %1906 = vmatpush.bf16.msra.mxu0 %v1839
      %1907 = vmatpush.bf16.msra.mxu0 %v1838
      %1908 = vmatpush.bf16.msra.mxu0 %v1837
      %1909 = vmatpush.bf16.msra.mxu0 %v1836
      %1910 = vmatpush.bf16.msra.mxu0 %v1835
      %1911 = vmatpush.bf16.msra.mxu0 %v1834
      %1912 = vmatmul.bf16.gmra.mxu0 %v1667
      %v1913 = vpop.f32.mrf.mxu0
      %v1914 = vadd.f32 %v1895, %v1913
      %v1915 = vpop.f32.mrf.mxu0
      %v1916 = vadd.f32 %v1897, %v1915
      %1917 = vmatmul.bf16.gmra.mxu0 %v1669
      %v1918 = vpop.f32.mrf.mxu0
      %v1919 = vadd.f32 %v1900, %v1918
      %v1920 = vpop.f32.mrf.mxu0
      %v1921 = vadd.f32 %v1902, %v1920
      %1922 = vdwg.mxu0
      %v1923 = vmul.f32 %v1914, 0.01
      %v1924 = vmul.f32 %v1916, 0.01
      %v1925 = vmul.f32 %v1919, 0.01
      %v1926 = vmul.f32 %v1921, 0.01
      %v1927 = vmax.f32 %v1914, %v1923
      %v1928 = vmax.f32 %v1916, %v1924
      %v1929 = vmax.f32 %v1919, %v1925
      %v1930 = vmax.f32 %v1921, %v1926
      %v1931 = vld [vmem:[%s14] sm:$0x1]
      %v1933 = vperm.slane %v1931, 0
      %v1935 = vadd.f32 %v1927, %v1933
      %v1936 = vadd.f32 %v1928, %v1933
      %v1937 = vadd.f32 %v1929, %v1933
      %v1938 = vadd.f32 %v1930, %v1933
      %v1939 = vadd.f32 %v1935, %v768
      %v1940 = vadd.f32 %v1936, %v769
      %v1941 = vadd.f32 %v1937, %v770
      %v1942 = vadd.f32 %v1938, %v771
      %1943 = vst [vmem:[%s611] sm:$0xff] %v1939
      %1944 = vst [vmem:[%s611 + $0x8] sm:$0xff] %v1940
      %1945 = vst [vmem:[%s611 + $0x10] sm:$0xff] %v1941
      %1946 = vst [vmem:[%s611 + $0x18] sm:$0xff] %v1942
      %v1947 = vpack.c.bf16 %v1940, %v1939
      %v1948 = vpack.c.bf16 %v1942, %v1941
      %v1949 = vld [vmem:[%s15] sm:$0xf]
      %vm1950 = vcmask 261120
      %v1952 = vsel %vm1950, %v1949, 0
      %1954 = vmatpush.bf16.msra.mxu0 0
      %1955 = vmatpush.bf16.msra.mxu0 0
      %1956 = vmatpush.bf16.msra.mxu0 0
      %1957 = vmatpush.bf16.msra.mxu0 0
      %1958 = vmatpush.bf16.msra.mxu0 0
      %1959 = vmatpush.bf16.msra.mxu0 0
      %1960 = vmatpush.bf16.msra.mxu0 %v1948
      %1961 = vmatpush.bf16.msra.mxu0 %v1947
      %1962 = vmatmul.bf16.gmra.mxu0 %v1952
      %v1963 = vpop.f32.mrf.mxu0
      %v1964 = vadd.f32 0.0, %v1963
      %v1965 = vpop.f32.mrf.mxu0
      %1966 = vdwg.mxu0
      %v1967 = vld [vmem:[%s16] sm:$0xf]
      %v1969 = vsel %vm1950, %v1967, 0
      %1971 = vmatpush.bf16.msra.mxu0 0
      %1972 = vmatpush.bf16.msra.mxu0 0
      %1973 = vmatpush.bf16.msra.mxu0 0
      %1974 = vmatpush.bf16.msra.mxu0 0
      %1975 = vmatpush.bf16.msra.mxu0 0
      %1976 = vmatpush.bf16.msra.mxu0 0
      %1977 = vmatpush.bf16.msra.mxu0 %v1948
      %1978 = vmatpush.bf16.msra.mxu0 %v1947
      %1979 = vmatmul.bf16.gmra.mxu0 %v1969
      %v1980 = vpop.f32.mrf.mxu0
      %v1981 = vadd.f32 0.0, %v1980
      %v1982 = vpop.f32.mrf.mxu0
      %1983 = vdwg.mxu0
      %v1984 = vpack.c.bf16 %v1964, %v1964
      %v1985 = vpack.c.bf16 %v1981, %v1981
      %v1986 = vld [vmem:[%s17] sm:$0xf]
      %v1987 = vld [vmem:[%s17 + $0x4] sm:$0xf]
      %v1988 = vld [vmem:[%s17 + $0x8] sm:$0xf]
      %v1989 = vld [vmem:[%s17 + $0xc] sm:$0xf]
      %v1990 = vld [vmem:[%s17 + $0x10] sm:$0xf]
      %v1991 = vld [vmem:[%s17 + $0x14] sm:$0xf]
      %v1992 = vld [vmem:[%s17 + $0x18] sm:$0xf]
      %v1993 = vld [vmem:[%s17 + $0x1c] sm:$0xf]
      %v1994 = vld [vmem:[%s17 + $0x20] sm:$0xf]
      %v1995 = vld [vmem:[%s17 + $0x24] sm:$0xf]
      %v1996 = vld [vmem:[%s17 + $0x28] sm:$0xf]
      %v1997 = vld [vmem:[%s17 + $0x2c] sm:$0xf]
      %v1998 = vld [vmem:[%s17 + $0x30] sm:$0xf]
      %v1999 = vld [vmem:[%s17 + $0x34] sm:$0xf]
      %v2000 = vld [vmem:[%s17 + $0x38] sm:$0xf]
      %v2001 = vld [vmem:[%s17 + $0x3c] sm:$0xf]
      %v2002 = vld [vmem:[%s17 + $0x40] sm:$0xf]
      %v2003 = vld [vmem:[%s17 + $0x44] sm:$0xf]
      %v2004 = vld [vmem:[%s17 + $0x48] sm:$0xf]
      %v2005 = vld [vmem:[%s17 + $0x4c] sm:$0xf]
      %v2006 = vld [vmem:[%s17 + $0x50] sm:$0xf]
      %v2007 = vld [vmem:[%s17 + $0x54] sm:$0xf]
      %v2008 = vld [vmem:[%s17 + $0x58] sm:$0xf]
      %v2009 = vld [vmem:[%s17 + $0x5c] sm:$0xf]
      %v2010 = vld [vmem:[%s17 + $0x60] sm:$0xf]
      %v2011 = vld [vmem:[%s17 + $0x64] sm:$0xf]
      %v2012 = vld [vmem:[%s17 + $0x68] sm:$0xf]
      %v2013 = vld [vmem:[%s17 + $0x6c] sm:$0xf]
      %v2014 = vld [vmem:[%s17 + $0x70] sm:$0xf]
      %v2015 = vld [vmem:[%s17 + $0x74] sm:$0xf]
      %v2016 = vld [vmem:[%s17 + $0x78] sm:$0xf]
      %v2017 = vld [vmem:[%s17 + $0x7c] sm:$0xf]
      %v2050 = vunpack.c.l.b16 %v1986
      %v2051 = vunpack.c.l.b16 %v1987
      %v2052 = vunpack.c.l.b16 %v1988
      %v2053 = vunpack.c.l.b16 %v1989
      %v2054 = vunpack.c.l.b16 %v1990
      %v2055 = vunpack.c.l.b16 %v1991
      %v2056 = vunpack.c.l.b16 %v1992
      %v2057 = vunpack.c.l.b16 %v1993
      %v2058 = vunpack.c.l.b16 %v1994
      %v2059 = vunpack.c.l.b16 %v1995
      %v2060 = vunpack.c.l.b16 %v1996
      %v2061 = vunpack.c.l.b16 %v1997
      %v2062 = vunpack.c.l.b16 %v1998
      %v2063 = vunpack.c.l.b16 %v1999
      %v2064 = vunpack.c.l.b16 %v2000
      %v2065 = vunpack.c.l.b16 %v2001
      %v2066 = vunpack.c.l.b16 %v2002
      %v2067 = vunpack.c.l.b16 %v2003
      %v2068 = vunpack.c.l.b16 %v2004
      %v2069 = vunpack.c.l.b16 %v2005
      %v2070 = vunpack.c.l.b16 %v2006
      %v2071 = vunpack.c.l.b16 %v2007
      %v2072 = vunpack.c.l.b16 %v2008
      %v2073 = vunpack.c.l.b16 %v2009
      %v2074 = vunpack.c.l.b16 %v2010
      %v2075 = vunpack.c.l.b16 %v2011
      %v2076 = vunpack.c.l.b16 %v2012
      %v2077 = vunpack.c.l.b16 %v2013
      %v2078 = vunpack.c.l.b16 %v2014
      %v2079 = vunpack.c.l.b16 %v2015
      %v2080 = vunpack.c.l.b16 %v2016
      %v2081 = vunpack.c.l.b16 %v2017
      %v2082 = vpack.c.b16 %v2051, %v2050
      %v2083 = vpack.c.b16 %v2053, %v2052
      %v2084 = vpack.c.b16 %v2055, %v2054
      %v2085 = vpack.c.b16 %v2057, %v2056
      %v2086 = vpack.c.b16 %v2059, %v2058
      %v2087 = vpack.c.b16 %v2061, %v2060
      %v2088 = vpack.c.b16 %v2063, %v2062
      %v2089 = vpack.c.b16 %v2065, %v2064
      %v2090 = vpack.c.b16 %v2067, %v2066
      %v2091 = vpack.c.b16 %v2069, %v2068
      %v2092 = vpack.c.b16 %v2071, %v2070
      %v2093 = vpack.c.b16 %v2073, %v2072
      %v2094 = vpack.c.b16 %v2075, %v2074
      %v2095 = vpack.c.b16 %v2077, %v2076
      %v2096 = vpack.c.b16 %v2079, %v2078
      %v2097 = vpack.c.b16 %v2081, %v2080
      %2114 = vmatpush.bf16.msra.mxu0 %v2089
      %2115 = vmatpush.bf16.msra.mxu0 %v2088
      %2116 = vmatpush.bf16.msra.mxu0 %v2087
      %2117 = vmatpush.bf16.msra.mxu0 %v2086
      %2118 = vmatpush.bf16.msra.mxu0 %v2085
      %2119 = vmatpush.bf16.msra.mxu0 %v2084
      %2120 = vmatpush.bf16.msra.mxu0 %v2083
      %2121 = vmatpush.bf16.msra.mxu0 %v2082
      %2122 = vmatmul.bf16.gmra.mxu0 %v1984
      %v2123 = vpop.f32.mrf.mxu0
      %v2124 = vadd.f32 0.0, %v2123
      %v2125 = vpop.f32.mrf.mxu0
      %2126 = vdwg.mxu0
      %2127 = vmatpush.bf16.msra.mxu0 %v2097
      %2128 = vmatpush.bf16.msra.mxu0 %v2096
      %2129 = vmatpush.bf16.msra.mxu0 %v2095
      %2130 = vmatpush.bf16.msra.mxu0 %v2094
      %2131 = vmatpush.bf16.msra.mxu0 %v2093
      %2132 = vmatpush.bf16.msra.mxu0 %v2092
      %2133 = vmatpush.bf16.msra.mxu0 %v2091
      %2134 = vmatpush.bf16.msra.mxu0 %v2090
      %2135 = vmatmul.bf16.gmra.mxu0 %v1985
      %v2136 = vpop.f32.mrf.mxu0
      %v2137 = vadd.f32 %v2124, %v2136
      %v2138 = vpop.f32.mrf.mxu0
      %2139 = vdwg.mxu0
      %2140 = vst [vmem:[%s616] sm:$0xff] %v2137
      %s2141 = smul.u32 4, %s31
      %p2142 = scmp.lt.s32.totalorder %s2141, 7
      %s2143 = scalar_select %p2142, %s2141, 7
      %s2144 = smul.addr %s2143, 8
      %s2145 = scalar_lea.vmem %s18, %s2144
      %p2146 = scmp.lt.s32.totalorder %s31, 1
      %s2147 = scalar_select %p2146, %s31, 1
      %s2148 = smul.addr %s2147, 8
      %s2149 = scalar_lea.vmem %s19, %s2148
      // Predicated region
      $region93: #{res_block_forward.1} parent=91 // pred_check
        %p2150 = pneg %p432
      $region94: #{res_block_forward.1} parent=91 // pred_check_branch
        %2152 = sbr.rel (%p2150) target = $region96
      $region95: #{res_block_forward.1} parent=91 // pred_region
        %s2153 = smul.u32 4, %s31
      $region96: #{res_block_forward.1} parent=91 // pred_fallthru
        _
      // Predicated region
      $region97: #{res_block_forward.1} parent=91 // pred_check
        %p2154 = pneg %p458
      $region98: #{res_block_forward.1} parent=91 // pred_check_branch
        %2156 = sbr.rel (%p2154) target = $region100
      $region99: #{res_block_forward.1} parent=91 // pred_region
        _
      $region100: #{res_block_forward.1} parent=91 // pred_fallthru
        _
    $region92: #{res_block_forward.1} parent=5 // pred_fallthru
      _
    %p2157 = scmp.le.s32.totalorder 2, %s26
    // Predicated region
    $region101: #{res_block_forward.1} parent=5 // pred_check
      %p2158 = pneg %p2157
    $region102: #{res_block_forward.1} parent=5 // pred_check_branch
      %2160 = sbr.rel (%p2158) target = $region104
    $region103: #{res_block_forward.1} parent=5 // pred_region
      %s2161 = ssub.s32 %s26, 2
      // Predicated region
      $region105: #{res_block_forward.1} parent=103 // pred_check
        %p2162 = pneg %p438
      $region106: #{res_block_forward.1} parent=103 // pred_check_branch
        %2164 = sbr.rel (%p2162) target = $region108
      $region107: #{res_block_forward.1} parent=103 // pred_region
        %s2165 = smul.u32 4, %s32
        %p2166 = scmp.lt.s32.totalorder %s2165, 7
        %s2167 = scalar_select %p2166, %s2165, 7
        %s2168 = smul.addr %s2167, 8
        %s2169 = scalar_lea.vmem %s18, %s2168
      $region108: #{res_block_forward.1} parent=103 // pred_fallthru
        _
      // Predicated region
      $region109: #{res_block_forward.1} parent=103 // pred_check
        %p2170 = pneg %p464
      $region110: #{res_block_forward.1} parent=103 // pred_check_branch
        %2172 = sbr.rel (%p2170) target = $region112
      $region111: #{res_block_forward.1} parent=103 // pred_region
        %p2173 = scmp.lt.s32.totalorder %s32, 1
        %s2174 = scalar_select %p2173, %s32, 1
        %s2175 = smul.addr %s2174, 8
        %s2176 = scalar_lea.vmem %s19, %s2175
      $region112: #{res_block_forward.1} parent=103 // pred_fallthru
        _
    $region104: #{res_block_forward.1} parent=5 // pred_fallthru
      _
  $region6: #{res_block_forward.1} parent=0 // loop_footer
    %s30 = sadd.s32 1, %s26
  $region7: #{res_block_forward.1} parent=0 // loop_footer_branch
    %25 = sbr.rel target = $region3
  $region8: #{res_block_forward.1} parent=0 // loop_exit
    _

</llo_original>
